<compile_context>
chip_gen: v7x
topology: tpu7x:2x2x1
jax: 0.10.0
libtpu: 0.0.40
codegen_flags: <defaults>
</compile_context>

<pallas_src>
import math

import jax
import jax.numpy as jnp
from jax import lax
from jax.experimental import pallas as pl
from jax.experimental.pallas import tpu as pltpu

# ---------------- model hyper-params (small, consistent with the module) ----
B = 2        # batch
S = 8        # sequence length
D = 32       # model dim
H = 4        # attention heads
DK = D // H  # head dim
DFF = 64     # feed-forward hidden dim
EPS = 1e-5
QKV_PAD = 128          # fused QKV projection padded to a full 128-lane tile


def _layer_norm(x, gamma, beta):
    # x: (B*S, D) f32; gamma/beta: (1, D) f32
    mu = jnp.mean(x, axis=-1, keepdims=True)
    xc = x - mu
    var = jnp.mean(xc * xc, axis=-1, keepdims=True)
    inv = lax.rsqrt(var + EPS)
    return xc * inv * gamma + beta


def encoder_block_kernel(
    x_ref, mask_ref,
    wqkv_ref, bqkv_ref, wo_ref, bo_ref,
    g1_ref, be1_ref,
    w1_ref, b1_ref, w2_ref, b2_ref,
    g2_ref, be2_ref,
    out_ref,
    ctx_ref,            # VMEM scratch (B*S, D) f32: merged-head context
):
    x = x_ref[...]                         # (B*S, D) f32, batch folded into rows
    mask = mask_ref[...]                   # (S, S) additive: 0 keep / -1e9 masked

    # ---------------- multi-head self-attention ----------------------------
    # fused QKV projection: bf16 operands, f32 accumulation, 128 output lanes
    qkv = jnp.dot(x.astype(jnp.bfloat16), wqkv_ref[...],
                  preferred_element_type=jnp.float32) + bqkv_ref[...]   # (16, 128)
    q = qkv[:, 0 * D:1 * D]
    k = qkv[:, 1 * D:2 * D]
    v = qkv[:, 2 * D:3 * D]                # pad lanes 96:128 ignored

    scale = 1.0 / math.sqrt(DK)

    # per-(batch, head) scores via static sublane/lane slices (no 4-D transposes)
    s_list = []
    for b in range(B):
        qb = q[b * S:(b + 1) * S, :]                       # (S, D)
        kb = k[b * S:(b + 1) * S, :]
        for h in range(H):
            qh = qb[:, h * DK:(h + 1) * DK]                # (S, DK)
            kh = kb[:, h * DK:(h + 1) * DK]
            # 'id,jd->ij' : contract on DK without materializing kh^T
            s_list.append(lax.dot_general(qh, kh, (((1,), (1,)), ((), ())),
                                          preferred_element_type=jnp.float32))
    scores = jnp.stack(s_list, axis=0) * scale + mask[None, :, :]   # (B*H, S, S)

    # one batched, numerically-stable softmax over all (batch, head) tiles
    m = jnp.max(scores, axis=-1, keepdims=True)
    p = jnp.exp(scores - m)
    denom = jnp.sum(p, axis=-1, keepdims=True)
    attn = p * pl.reciprocal(denom, approx=True)   # EUP reciprocal, frees VALU

    # context: each (S, DK) head tile lands directly at its final (row, lane)
    # position in the VMEM scratch -> heads merge with no concat/transpose
    for b in range(B):
        vb = v[b * S:(b + 1) * S, :]
        for h in range(H):
            vh = vb[:, h * DK:(h + 1) * DK]
            ctx_ref[b * S:(b + 1) * S, h * DK:(h + 1) * DK] = jnp.dot(
                attn[b * H + h], vh, preferred_element_type=jnp.float32)

    ctx = ctx_ref[...]                                                 # (B*S, D)
    attn_out = jnp.dot(ctx.astype(jnp.bfloat16), wo_ref[...],
                       preferred_element_type=jnp.float32) + bo_ref[...]

    # dropout (eval mode) -> identity
    h1 = _layer_norm(attn_out + x, g1_ref[...], be1_ref[...])          # (B*S, D)

    # ---------------- feed-forward ------------------------------------------
    ff = jnp.dot(h1.astype(jnp.bfloat16), w1_ref[...],
                 preferred_element_type=jnp.float32) + b1_ref[...]
    ff = jnp.maximum(ff, 0.0)
    ff = jnp.dot(ff.astype(jnp.bfloat16), w2_ref[...],
                 preferred_element_type=jnp.float32) + b2_ref[...]

    # dropout (eval mode) -> identity
    h2 = _layer_norm(ff + h1, g2_ref[...], be2_ref[...])               # (B*S, D)

    out_ref[...] = h2.astype(out_ref.dtype)


def encoder_block(x, add_mask, params):
    """x: (B, S, D) f32, add_mask: (S, S) f32 additive (0 keep / -1e9 masked)."""
    x2d = x.reshape(B * S, D)   # hoisted reshape: wrapper-side layout plumbing

    weight_args = [
        params['wqkv'], params['bqkv'], params['wo'], params['bo'],
        params['g1'], params['be1'],
        params['w1'], params['b1'], params['w2'], params['b2'],
        params['g2'], params['be2'],
    ]
    n_in = 2 + len(weight_args)
    vmem = pl.BlockSpec(memory_space=pltpu.MemorySpace.VMEM)

    # Rough flop/byte hint so XLA can schedule around this tiny custom call
    # (scheduling hint only; no in-kernel effect).
    cost = pl.CostEstimate(flops=320_000, transcendentals=600,
                           bytes_accessed=24_000)

    out2d = pl.pallas_call(
        encoder_block_kernel,
        out_shape=jax.ShapeDtypeStruct((B * S, D), jnp.float32),
        in_specs=[vmem] * n_in,
        out_specs=vmem,
        scratch_shapes=[pltpu.VMEM((B * S, D), jnp.float32)],
        cost_estimate=cost,
    )(x2d, add_mask, *weight_args)

    return out2d.reshape(B, S, D)


def init_params(key):
    ks = jax.random.split(key, 6)

    def lin(k, din, dout, scale=0.02):
        return (scale * jax.random.normal(k, (din, dout), jnp.float32),
                jnp.zeros((1, dout), jnp.float32))

    wq, bq = lin(ks[0], D, D)
    wk, bk = lin(ks[1], D, D)
    wv, bv = lin(ks[2], D, D)
    wo, bo = lin(ks[3], D, D)
    w1, b1 = lin(ks[4], D, DFF)
    w2, b2 = lin(ks[5], DFF, D)

    # Pre-fuse the Q/K/V projection weights into one (D, 3D) matmul and pad
    # the output dim to 128 lanes (pad lanes are zero and ignored in-kernel).
    wqkv = jnp.concatenate([wq, wk, wv], axis=1)                    # (D, 3D)
    bqkv = jnp.concatenate([bq, bk, bv], axis=1)                    # (1, 3D)
    wqkv = jnp.pad(wqkv, ((0, 0), (0, QKV_PAD - 3 * D)))            # (D, 128)
    bqkv = jnp.pad(bqkv, ((0, 0), (0, QKV_PAD - 3 * D)))            # (1, 128)

    bf = lambda w: w.astype(jnp.bfloat16)   # matmul weights stored bf16
    return dict(
        wqkv=bf(wqkv), bqkv=bqkv, wo=bf(wo), bo=bo,
        w1=bf(w1), b1=b1, w2=bf(w2), b2=b2,
        g1=jnp.ones((1, D), jnp.float32), be1=jnp.zeros((1, D), jnp.float32),
        g2=jnp.ones((1, D), jnp.float32), be2=jnp.zeros((1, D), jnp.float32),
    )


if __name__ == "__main__":
    key = jax.random.PRNGKey(0)
    kx, kp = jax.random.split(key)
    x = jax.random.normal(kx, (B, S, D), jnp.float32)

    # causal mask converted to additive form: 0 where allowed (j <= i), -1e9 masked
    causal_mask = jnp.tril(jnp.ones((S, S), jnp.float32))
    add_mask = jnp.where(causal_mask > 0, 0.0, -1e9).astype(jnp.float32)

    params = init_params(kp)

    out = encoder_block(x, add_mask, params)
    out = jax.block_until_ready(out)
    assert out.shape == (B, S, D)
    assert bool(jnp.all(jnp.isfinite(out)))
    print("KERNEL_OK")
</pallas_src>

<mosaic_0001>
module attributes {stable_mosaic.version = 11 : i64} {
  func.func @encoder_block_kernel(%arg0: memref<16x32xf32, #tpu.memory_space<vmem>>, %arg1: memref<8x8xf32, #tpu.memory_space<vmem>>, %arg2: memref<32x128xbf16, #tpu.memory_space<vmem>>, %arg3: memref<1x128xf32, #tpu.memory_space<vmem>>, %arg4: memref<32x32xbf16, #tpu.memory_space<vmem>>, %arg5: memref<1x32xf32, #tpu.memory_space<vmem>>, %arg6: memref<1x32xf32, #tpu.memory_space<vmem>>, %arg7: memref<1x32xf32, #tpu.memory_space<vmem>>, %arg8: memref<32x64xbf16, #tpu.memory_space<vmem>>, %arg9: memref<1x64xf32, #tpu.memory_space<vmem>>, %arg10: memref<64x32xbf16, #tpu.memory_space<vmem>>, %arg11: memref<1x32xf32, #tpu.memory_space<vmem>>, %arg12: memref<1x32xf32, #tpu.memory_space<vmem>>, %arg13: memref<1x32xf32, #tpu.memory_space<vmem>>, %arg14: memref<16x32xf32, #tpu.memory_space<vmem>>, %arg15: memref<16x32xf32, #tpu.memory_space<vmem>>) attributes {dimension_semantics = [], scalar_prefetch = 0 : i64, scratch_operands = 1 : i64, tpu.core_type = #tpu.core_type<tc>} {
    %c0 = arith.constant 0 : index
    %c0_0 = arith.constant 0 : index
    %0 = vector.load %arg0[%c0, %c0_0] : memref<16x32xf32, #tpu.memory_space<vmem>>, vector<16x32xf32>
    %c0_1 = arith.constant 0 : index
    %c0_2 = arith.constant 0 : index
    %1 = vector.load %arg1[%c0_1, %c0_2] : memref<8x8xf32, #tpu.memory_space<vmem>>, vector<8x8xf32>
    %2 = arith.truncf %0 : vector<16x32xf32> to vector<16x32xbf16>
    %c0_3 = arith.constant 0 : index
    %c0_4 = arith.constant 0 : index
    %3 = vector.load %arg2[%c0_3, %c0_4] : memref<32x128xbf16, #tpu.memory_space<vmem>>, vector<32x128xbf16>
    %cst = arith.constant dense<0.000000e+00> : vector<16x128xf32>
    %4 = tpu.matmul %2, %3, %cst {dimension_numbers = #tpu.dot_dimension_numbers<[1], [0], [0], [1], [0, 0, 1, 1], [], []>} : vector<16x32xbf16>, vector<32x128xbf16>, vector<16x128xf32> -> vector<16x128xf32>
    %c0_5 = arith.constant 0 : index
    %c0_6 = arith.constant 0 : index
    %5 = vector.load %arg3[%c0_5, %c0_6] : memref<1x128xf32, #tpu.memory_space<vmem>>, vector<1x128xf32>
    %6 = vector.broadcast %5 : vector<1x128xf32> to vector<16x128xf32>
    %7 = arith.addf %4, %6 : vector<16x128xf32>
    %8 = vector.extract_strided_slice %7 {offsets = [0, 0], sizes = [16, 32], strides = [1, 1]} : vector<16x128xf32> to vector<16x32xf32>
    %9 = vector.extract_strided_slice %7 {offsets = [0, 32], sizes = [16, 32], strides = [1, 1]} : vector<16x128xf32> to vector<16x32xf32>
    %10 = vector.extract_strided_slice %7 {offsets = [0, 64], sizes = [16, 32], strides = [1, 1]} : vector<16x128xf32> to vector<16x32xf32>
    %11 = vector.extract_strided_slice %8 {offsets = [0, 0], sizes = [8, 32], strides = [1, 1]} : vector<16x32xf32> to vector<8x32xf32>
    %12 = vector.extract_strided_slice %9 {offsets = [0, 0], sizes = [8, 32], strides = [1, 1]} : vector<16x32xf32> to vector<8x32xf32>
    %13 = vector.extract_strided_slice %11 {offsets = [0, 0], sizes = [8, 8], strides = [1, 1]} : vector<8x32xf32> to vector<8x8xf32>
    %14 = vector.extract_strided_slice %12 {offsets = [0, 0], sizes = [8, 8], strides = [1, 1]} : vector<8x32xf32> to vector<8x8xf32>
    %cst_7 = arith.constant dense<0.000000e+00> : vector<8x8xf32>
    %15 = tpu.matmul %13, %14, %cst_7 {dimension_numbers = #tpu.dot_dimension_numbers<[1], [1], [0], [0], [0, 0, 1, 0], [], []>} : vector<8x8xf32>, vector<8x8xf32>, vector<8x8xf32> -> vector<8x8xf32>
    %16 = vector.extract_strided_slice %11 {offsets = [0, 8], sizes = [8, 8], strides = [1, 1]} : vector<8x32xf32> to vector<8x8xf32>
    %17 = vector.extract_strided_slice %12 {offsets = [0, 8], sizes = [8, 8], strides = [1, 1]} : vector<8x32xf32> to vector<8x8xf32>
    %cst_8 = arith.constant dense<0.000000e+00> : vector<8x8xf32>
    %18 = tpu.matmul %16, %17, %cst_8 {dimension_numbers = #tpu.dot_dimension_numbers<[1], [1], [0], [0], [0, 0, 1, 0], [], []>} : vector<8x8xf32>, vector<8x8xf32>, vector<8x8xf32> -> vector<8x8xf32>
    %19 = vector.extract_strided_slice %11 {offsets = [0, 16], sizes = [8, 8], strides = [1, 1]} : vector<8x32xf32> to vector<8x8xf32>
    %20 = vector.extract_strided_slice %12 {offsets = [0, 16], sizes = [8, 8], strides = [1, 1]} : vector<8x32xf32> to vector<8x8xf32>
    %cst_9 = arith.constant dense<0.000000e+00> : vector<8x8xf32>
    %21 = tpu.matmul %19, %20, %cst_9 {dimension_numbers = #tpu.dot_dimension_numbers<[1], [1], [0], [0], [0, 0, 1, 0], [], []>} : vector<8x8xf32>, vector<8x8xf32>, vector<8x8xf32> -> vector<8x8xf32>
    %22 = vector.extract_strided_slice %11 {offsets = [0, 24], sizes = [8, 8], strides = [1, 1]} : vector<8x32xf32> to vector<8x8xf32>
    %23 = vector.extract_strided_slice %12 {offsets = [0, 24], sizes = [8, 8], strides = [1, 1]} : vector<8x32xf32> to vector<8x8xf32>
    %cst_10 = arith.constant dense<0.000000e+00> : vector<8x8xf32>
    %24 = tpu.matmul %22, %23, %cst_10 {dimension_numbers = #tpu.dot_dimension_numbers<[1], [1], [0], [0], [0, 0, 1, 0], [], []>} : vector<8x8xf32>, vector<8x8xf32>, vector<8x8xf32> -> vector<8x8xf32>
    %25 = vector.extract_strided_slice %8 {offsets = [8, 0], sizes = [8, 32], strides = [1, 1]} : vector<16x32xf32> to vector<8x32xf32>
    %26 = vector.extract_strided_slice %9 {offsets = [8, 0], sizes = [8, 32], strides = [1, 1]} : vector<16x32xf32> to vector<8x32xf32>
    %27 = vector.extract_strided_slice %25 {offsets = [0, 0], sizes = [8, 8], strides = [1, 1]} : vector<8x32xf32> to vector<8x8xf32>
    %28 = vector.extract_strided_slice %26 {offsets = [0, 0], sizes = [8, 8], strides = [1, 1]} : vector<8x32xf32> to vector<8x8xf32>
    %cst_11 = arith.constant dense<0.000000e+00> : vector<8x8xf32>
    %29 = tpu.matmul %27, %28, %cst_11 {dimension_numbers = #tpu.dot_dimension_numbers<[1], [1], [0], [0], [0, 0, 1, 0], [], []>} : vector<8x8xf32>, vector<8x8xf32>, vector<8x8xf32> -> vector<8x8xf32>
    %30 = vector.extract_strided_slice %25 {offsets = [0, 8], sizes = [8, 8], strides = [1, 1]} : vector<8x32xf32> to vector<8x8xf32>
    %31 = vector.extract_strided_slice %26 {offsets = [0, 8], sizes = [8, 8], strides = [1, 1]} : vector<8x32xf32> to vector<8x8xf32>
    %cst_12 = arith.constant dense<0.000000e+00> : vector<8x8xf32>
    %32 = tpu.matmul %30, %31, %cst_12 {dimension_numbers = #tpu.dot_dimension_numbers<[1], [1], [0], [0], [0, 0, 1, 0], [], []>} : vector<8x8xf32>, vector<8x8xf32>, vector<8x8xf32> -> vector<8x8xf32>
    %33 = vector.extract_strided_slice %25 {offsets = [0, 16], sizes = [8, 8], strides = [1, 1]} : vector<8x32xf32> to vector<8x8xf32>
    %34 = vector.extract_strided_slice %26 {offsets = [0, 16], sizes = [8, 8], strides = [1, 1]} : vector<8x32xf32> to vector<8x8xf32>
    %cst_13 = arith.constant dense<0.000000e+00> : vector<8x8xf32>
    %35 = tpu.matmul %33, %34, %cst_13 {dimension_numbers = #tpu.dot_dimension_numbers<[1], [1], [0], [0], [0, 0, 1, 0], [], []>} : vector<8x8xf32>, vector<8x8xf32>, vector<8x8xf32> -> vector<8x8xf32>
    %36 = vector.extract_strided_slice %25 {offsets = [0, 24], sizes = [8, 8], strides = [1, 1]} : vector<8x32xf32> to vector<8x8xf32>
    %37 = vector.extract_strided_slice %26 {offsets = [0, 24], sizes = [8, 8], strides = [1, 1]} : vector<8x32xf32> to vector<8x8xf32>
    %cst_14 = arith.constant dense<0.000000e+00> : vector<8x8xf32>
    %38 = tpu.matmul %36, %37, %cst_14 {dimension_numbers = #tpu.dot_dimension_numbers<[1], [1], [0], [0], [0, 0, 1, 0], [], []>} : vector<8x8xf32>, vector<8x8xf32>, vector<8x8xf32> -> vector<8x8xf32>
    %39 = vector.shape_cast %15 : vector<8x8xf32> to vector<1x8x8xf32>
    %40 = vector.shape_cast %18 : vector<8x8xf32> to vector<1x8x8xf32>
    %41 = vector.shape_cast %21 : vector<8x8xf32> to vector<1x8x8xf32>
    %42 = vector.shape_cast %24 : vector<8x8xf32> to vector<1x8x8xf32>
    %43 = vector.shape_cast %29 : vector<8x8xf32> to vector<1x8x8xf32>
    %44 = vector.shape_cast %32 : vector<8x8xf32> to vector<1x8x8xf32>
    %45 = vector.shape_cast %35 : vector<8x8xf32> to vector<1x8x8xf32>
    %46 = vector.shape_cast %38 : vector<8x8xf32> to vector<1x8x8xf32>
    %47 = tpu.concatenate %39, %40, %41, %42, %43, %44, %45, %46 in 0 : vector<1x8x8xf32>, vector<1x8x8xf32>, vector<1x8x8xf32>, vector<1x8x8xf32>, vector<1x8x8xf32>, vector<1x8x8xf32>, vector<1x8x8xf32>, vector<1x8x8xf32> -> vector<8x8x8xf32>
    %cst_15 = arith.constant 0.353553385 : f32
    %48 = vector.broadcast %cst_15 : f32 to vector<8x8x8xf32>
    %49 = arith.mulf %47, %48 : vector<8x8x8xf32>
    %50 = vector.shape_cast %1 : vector<8x8xf32> to vector<1x8x8xf32>
    %51 = vector.broadcast %50 : vector<1x8x8xf32> to vector<8x8x8xf32>
    %52 = arith.addf %49, %51 : vector<8x8x8xf32>
    %cst_16 = arith.constant dense<0xFF800000> : vector<8x8xf32>
    %53 = vector.multi_reduction <maximumf>, %52, %cst_16 [2] : vector<8x8x8xf32> to vector<8x8xf32>
    %54 = vector.shape_cast %53 : vector<8x8xf32> to vector<8x8x1xf32>
    %55 = vector.broadcast %54 : vector<8x8x1xf32> to vector<8x8x8xf32>
    %56 = arith.subf %52, %55 : vector<8x8x8xf32>
    %57 = math.exp %56 : vector<8x8x8xf32>
    %cst_17 = arith.constant dense<0.000000e+00> : vector<8x8xf32>
    %58 = vector.multi_reduction <add>, %57, %cst_17 [2] : vector<8x8x8xf32> to vector<8x8xf32>
    %59 = vector.shape_cast %58 : vector<8x8xf32> to vector<8x8x1xf32>
    %60 = tpu.reciprocal %59 {approx = true} : vector<8x8x1xf32> -> vector<8x8x1xf32>
    %61 = vector.broadcast %60 : vector<8x8x1xf32> to vector<8x8x8xf32>
    %62 = arith.mulf %57, %61 : vector<8x8x8xf32>
    %63 = vector.extract_strided_slice %10 {offsets = [0, 0], sizes = [8, 32], strides = [1, 1]} : vector<16x32xf32> to vector<8x32xf32>
    %64 = vector.extract_strided_slice %63 {offsets = [0, 0], sizes = [8, 8], strides = [1, 1]} : vector<8x32xf32> to vector<8x8xf32>
    %65 = vector.extract_strided_slice %62 {offsets = [0, 0, 0], sizes = [1, 8, 8], strides = [1, 1, 1]} : vector<8x8x8xf32> to vector<1x8x8xf32>
    %66 = vector.shape_cast %65 : vector<1x8x8xf32> to vector<8x8xf32>
    %cst_18 = arith.constant dense<0.000000e+00> : vector<8x8xf32>
    %67 = tpu.matmul %66, %64, %cst_18 {dimension_numbers = #tpu.dot_dimension_numbers<[1], [0], [0], [1], [0, 0, 1, 1], [], []>} : vector<8x8xf32>, vector<8x8xf32>, vector<8x8xf32> -> vector<8x8xf32>
    %c0_19 = arith.constant 0 : index
    %c0_20 = arith.constant 0 : index
    %68 = vector.load %arg15[%c0_19, %c0_20] : memref<16x32xf32, #tpu.memory_space<vmem>>, vector<8x8xf32>
    tpu.vector_store %arg15[%c0_19, %c0_20], %67 {strides = array<i32>} : memref<16x32xf32, #tpu.memory_space<vmem>>, vector<8x8xf32>,
    %69 = vector.extract_strided_slice %63 {offsets = [0, 8], sizes = [8, 8], strides = [1, 1]} : vector<8x32xf32> to vector<8x8xf32>
    %70 = vector.extract_strided_slice %62 {offsets = [1, 0, 0], sizes = [1, 8, 8], strides = [1, 1, 1]} : vector<8x8x8xf32> to vector<1x8x8xf32>
    %71 = vector.shape_cast %70 : vector<1x8x8xf32> to vector<8x8xf32>
    %cst_21 = arith.constant dense<0.000000e+00> : vector<8x8xf32>
    %72 = tpu.matmul %71, %69, %cst_21 {dimension_numbers = #tpu.dot_dimension_numbers<[1], [0], [0], [1], [0, 0, 1, 1], [], []>} : vector<8x8xf32>, vector<8x8xf32>, vector<8x8xf32> -> vector<8x8xf32>
    %c0_22 = arith.constant 0 : index
    %c8 = arith.constant 8 : index
    %73 = vector.load %arg15[%c0_22, %c8] : memref<16x32xf32, #tpu.memory_space<vmem>>, vector<8x8xf32>
    tpu.vector_store %arg15[%c0_22, %c8], %72 {strides = array<i32>} : memref<16x32xf32, #tpu.memory_space<vmem>>, vector<8x8xf32>,
    %74 = vector.extract_strided_slice %63 {offsets = [0, 16], sizes = [8, 8], strides = [1, 1]} : vector<8x32xf32> to vector<8x8xf32>
    %75 = vector.extract_strided_slice %62 {offsets = [2, 0, 0], sizes = [1, 8, 8], strides = [1, 1, 1]} : vector<8x8x8xf32> to vector<1x8x8xf32>
    %76 = vector.shape_cast %75 : vector<1x8x8xf32> to vector<8x8xf32>
    %cst_23 = arith.constant dense<0.000000e+00> : vector<8x8xf32>
    %77 = tpu.matmul %76, %74, %cst_23 {dimension_numbers = #tpu.dot_dimension_numbers<[1], [0], [0], [1], [0, 0, 1, 1], [], []>} : vector<8x8xf32>, vector<8x8xf32>, vector<8x8xf32> -> vector<8x8xf32>
    %c0_24 = arith.constant 0 : index
    %c16 = arith.constant 16 : index
    %78 = vector.load %arg15[%c0_24, %c16] : memref<16x32xf32, #tpu.memory_space<vmem>>, vector<8x8xf32>
    tpu.vector_store %arg15[%c0_24, %c16], %77 {strides = array<i32>} : memref<16x32xf32, #tpu.memory_space<vmem>>, vector<8x8xf32>,
    %79 = vector.extract_strided_slice %63 {offsets = [0, 24], sizes = [8, 8], strides = [1, 1]} : vector<8x32xf32> to vector<8x8xf32>
    %80 = vector.extract_strided_slice %62 {offsets = [3, 0, 0], sizes = [1, 8, 8], strides = [1, 1, 1]} : vector<8x8x8xf32> to vector<1x8x8xf32>
    %81 = vector.shape_cast %80 : vector<1x8x8xf32> to vector<8x8xf32>
    %cst_25 = arith.constant dense<0.000000e+00> : vector<8x8xf32>
    %82 = tpu.matmul %81, %79, %cst_25 {dimension_numbers = #tpu.dot_dimension_numbers<[1], [0], [0], [1], [0, 0, 1, 1], [], []>} : vector<8x8xf32>, vector<8x8xf32>, vector<8x8xf32> -> vector<8x8xf32>
    %c0_26 = arith.constant 0 : index
    %c24 = arith.constant 24 : index
    %83 = vector.load %arg15[%c0_26, %c24] : memref<16x32xf32, #tpu.memory_space<vmem>>, vector<8x8xf32>
    tpu.vector_store %arg15[%c0_26, %c24], %82 {strides = array<i32>} : memref<16x32xf32, #tpu.memory_space<vmem>>, vector<8x8xf32>,
    %84 = vector.extract_strided_slice %10 {offsets = [8, 0], sizes = [8, 32], strides = [1, 1]} : vector<16x32xf32> to vector<8x32xf32>
    %85 = vector.extract_strided_slice %84 {offsets = [0, 0], sizes = [8, 8], strides = [1, 1]} : vector<8x32xf32> to vector<8x8xf32>
    %86 = vector.extract_strided_slice %62 {offsets = [4, 0, 0], sizes = [1, 8, 8], strides = [1, 1, 1]} : vector<8x8x8xf32> to vector<1x8x8xf32>
    %87 = vector.shape_cast %86 : vector<1x8x8xf32> to vector<8x8xf32>
    %cst_27 = arith.constant dense<0.000000e+00> : vector<8x8xf32>
    %88 = tpu.matmul %87, %85, %cst_27 {dimension_numbers = #tpu.dot_dimension_numbers<[1], [0], [0], [1], [0, 0, 1, 1], [], []>} : vector<8x8xf32>, vector<8x8xf32>, vector<8x8xf32> -> vector<8x8xf32>
    %c8_28 = arith.constant 8 : index
    %c0_29 = arith.constant 0 : index
    %89 = vector.load %arg15[%c8_28, %c0_29] : memref<16x32xf32, #tpu.memory_space<vmem>>, vector<8x8xf32>
    tpu.vector_store %arg15[%c8_28, %c0_29], %88 {strides = array<i32>} : memref<16x32xf32, #tpu.memory_space<vmem>>, vector<8x8xf32>,
    %90 = vector.extract_strided_slice %84 {offsets = [0, 8], sizes = [8, 8], strides = [1, 1]} : vector<8x32xf32> to vector<8x8xf32>
    %91 = vector.extract_strided_slice %62 {offsets = [5, 0, 0], sizes = [1, 8, 8], strides = [1, 1, 1]} : vector<8x8x8xf32> to vector<1x8x8xf32>
    %92 = vector.shape_cast %91 : vector<1x8x8xf32> to vector<8x8xf32>
    %cst_30 = arith.constant dense<0.000000e+00> : vector<8x8xf32>
    %93 = tpu.matmul %92, %90, %cst_30 {dimension_numbers = #tpu.dot_dimension_numbers<[1], [0], [0], [1], [0, 0, 1, 1], [], []>} : vector<8x8xf32>, vector<8x8xf32>, vector<8x8xf32> -> vector<8x8xf32>
    %c8_31 = arith.constant 8 : index
    %c8_32 = arith.constant 8 : index
    %94 = vector.load %arg15[%c8_31, %c8_32] : memref<16x32xf32, #tpu.memory_space<vmem>>, vector<8x8xf32>
    tpu.vector_store %arg15[%c8_31, %c8_32], %93 {strides = array<i32>} : memref<16x32xf32, #tpu.memory_space<vmem>>, vector<8x8xf32>,
    %95 = vector.extract_strided_slice %84 {offsets = [0, 16], sizes = [8, 8], strides = [1, 1]} : vector<8x32xf32> to vector<8x8xf32>
    %96 = vector.extract_strided_slice %62 {offsets = [6, 0, 0], sizes = [1, 8, 8], strides = [1, 1, 1]} : vector<8x8x8xf32> to vector<1x8x8xf32>
    %97 = vector.shape_cast %96 : vector<1x8x8xf32> to vector<8x8xf32>
    %cst_33 = arith.constant dense<0.000000e+00> : vector<8x8xf32>
    %98 = tpu.matmul %97, %95, %cst_33 {dimension_numbers = #tpu.dot_dimension_numbers<[1], [0], [0], [1], [0, 0, 1, 1], [], []>} : vector<8x8xf32>, vector<8x8xf32>, vector<8x8xf32> -> vector<8x8xf32>
    %c8_34 = arith.constant 8 : index
    %c16_35 = arith.constant 16 : index
    %99 = vector.load %arg15[%c8_34, %c16_35] : memref<16x32xf32, #tpu.memory_space<vmem>>, vector<8x8xf32>
    tpu.vector_store %arg15[%c8_34, %c16_35], %98 {strides = array<i32>} : memref<16x32xf32, #tpu.memory_space<vmem>>, vector<8x8xf32>,
    %100 = vector.extract_strided_slice %84 {offsets = [0, 24], sizes = [8, 8], strides = [1, 1]} : vector<8x32xf32> to vector<8x8xf32>
    %101 = vector.extract_strided_slice %62 {offsets = [7, 0, 0], sizes = [1, 8, 8], strides = [1, 1, 1]} : vector<8x8x8xf32> to vector<1x8x8xf32>
    %102 = vector.shape_cast %101 : vector<1x8x8xf32> to vector<8x8xf32>
    %cst_36 = arith.constant dense<0.000000e+00> : vector<8x8xf32>
    %103 = tpu.matmul %102, %100, %cst_36 {dimension_numbers = #tpu.dot_dimension_numbers<[1], [0], [0], [1], [0, 0, 1, 1], [], []>} : vector<8x8xf32>, vector<8x8xf32>, vector<8x8xf32> -> vector<8x8xf32>
    %c8_37 = arith.constant 8 : index
    %c24_38 = arith.constant 24 : index
    %104 = vector.load %arg15[%c8_37, %c24_38] : memref<16x32xf32, #tpu.memory_space<vmem>>, vector<8x8xf32>
    tpu.vector_store %arg15[%c8_37, %c24_38], %103 {strides = array<i32>} : memref<16x32xf32, #tpu.memory_space<vmem>>, vector<8x8xf32>,
    %c0_39 = arith.constant 0 : index
    %c0_40 = arith.constant 0 : index
    %105 = vector.load %arg15[%c0_39, %c0_40] : memref<16x32xf32, #tpu.memory_space<vmem>>, vector<16x32xf32>
    %106 = arith.truncf %105 : vector<16x32xf32> to vector<16x32xbf16>
    %c0_41 = arith.constant 0 : index
    %c0_42 = arith.constant 0 : index
    %107 = vector.load %arg4[%c0_41, %c0_42] : memref<32x32xbf16, #tpu.memory_space<vmem>>, vector<32x32xbf16>
    %cst_43 = arith.constant dense<0.000000e+00> : vector<16x32xf32>
    %108 = tpu.matmul %106, %107, %cst_43 {dimension_numbers = #tpu.dot_dimension_numbers<[1], [0], [0], [1], [0, 0, 1, 1], [], []>} : vector<16x32xbf16>, vector<32x32xbf16>, vector<16x32xf32> -> vector<16x32xf32>
    %c0_44 = arith.constant 0 : index
    %c0_45 = arith.constant 0 : index
    %109 = vector.load %arg5[%c0_44, %c0_45] : memref<1x32xf32, #tpu.memory_space<vmem>>, vector<1x32xf32>
    %110 = vector.broadcast %109 : vector<1x32xf32> to vector<16x32xf32>
    %111 = arith.addf %108, %110 : vector<16x32xf32>
    %112 = arith.addf %111, %0 : vector<16x32xf32>
    %c0_46 = arith.constant 0 : index
    %c0_47 = arith.constant 0 : index
    %113 = vector.load %arg6[%c0_46, %c0_47] : memref<1x32xf32, #tpu.memory_space<vmem>>, vector<1x32xf32>
    %c0_48 = arith.constant 0 : index
    %c0_49 = arith.constant 0 : index
    %114 = vector.load %arg7[%c0_48, %c0_49] : memref<1x32xf32, #tpu.memory_space<vmem>>, vector<1x32xf32>
    %cst_50 = arith.constant dense<0.000000e+00> : vector<16xf32>
    %115 = vector.multi_reduction <add>, %112, %cst_50 [1] : vector<16x32xf32> to vector<16xf32>
    %116 = vector.shape_cast %115 : vector<16xf32> to vector<16x1xf32>
    %cst_51 = arith.constant 3.200000e+01 : f32
    %117 = vector.broadcast %cst_51 : f32 to vector<16x1xf32>
    %118 = arith.divf %116, %117 : vector<16x1xf32>
    %119 = vector.broadcast %118 : vector<16x1xf32> to vector<16x32xf32>
    %120 = arith.subf %112, %119 : vector<16x32xf32>
    %121 = arith.mulf %120, %120 : vector<16x32xf32>
    %cst_52 = arith.constant dense<0.000000e+00> : vector<16xf32>
    %122 = vector.multi_reduction <add>, %121, %cst_52 [1] : vector<16x32xf32> to vector<16xf32>
    %123 = vector.shape_cast %122 : vector<16xf32> to vector<16x1xf32>
    %cst_53 = arith.constant 3.200000e+01 : f32
    %124 = vector.broadcast %cst_53 : f32 to vector<16x1xf32>
    %125 = arith.divf %123, %124 : vector<16x1xf32>
    %cst_54 = arith.constant 9.99999974E-6 : f32
    %126 = vector.broadcast %cst_54 : f32 to vector<16x1xf32>
    %127 = arith.addf %125, %126 : vector<16x1xf32>
    %128 = math.rsqrt %127 : vector<16x1xf32>
    %129 = vector.broadcast %128 : vector<16x1xf32> to vector<16x32xf32>
    %130 = arith.mulf %120, %129 : vector<16x32xf32>
    %131 = vector.broadcast %113 : vector<1x32xf32> to vector<16x32xf32>
    %132 = arith.mulf %130, %131 : vector<16x32xf32>
    %133 = vector.broadcast %114 : vector<1x32xf32> to vector<16x32xf32>
    %134 = arith.addf %132, %133 : vector<16x32xf32>
    %135 = arith.truncf %134 : vector<16x32xf32> to vector<16x32xbf16>
    %c0_55 = arith.constant 0 : index
    %c0_56 = arith.constant 0 : index
    %136 = vector.load %arg8[%c0_55, %c0_56] : memref<32x64xbf16, #tpu.memory_space<vmem>>, vector<32x64xbf16>
    %cst_57 = arith.constant dense<0.000000e+00> : vector<16x64xf32>
    %137 = tpu.matmul %135, %136, %cst_57 {dimension_numbers = #tpu.dot_dimension_numbers<[1], [0], [0], [1], [0, 0, 1, 1], [], []>} : vector<16x32xbf16>, vector<32x64xbf16>, vector<16x64xf32> -> vector<16x64xf32>
    %c0_58 = arith.constant 0 : index
    %c0_59 = arith.constant 0 : index
    %138 = vector.load %arg9[%c0_58, %c0_59] : memref<1x64xf32, #tpu.memory_space<vmem>>, vector<1x64xf32>
    %139 = vector.broadcast %138 : vector<1x64xf32> to vector<16x64xf32>
    %140 = arith.addf %137, %139 : vector<16x64xf32>
    %cst_60 = arith.constant 0.000000e+00 : f32
    %141 = vector.broadcast %cst_60 : f32 to vector<16x64xf32>
    %142 = arith.maximumf %140, %141 : vector<16x64xf32>
    %143 = arith.truncf %142 : vector<16x64xf32> to vector<16x64xbf16>
    %c0_61 = arith.constant 0 : index
    %c0_62 = arith.constant 0 : index
    %144 = vector.load %arg10[%c0_61, %c0_62] : memref<64x32xbf16, #tpu.memory_space<vmem>>, vector<64x32xbf16>
    %cst_63 = arith.constant dense<0.000000e+00> : vector<16x32xf32>
    %145 = tpu.matmul %143, %144, %cst_63 {dimension_numbers = #tpu.dot_dimension_numbers<[1], [0], [0], [1], [0, 0, 1, 1], [], []>} : vector<16x64xbf16>, vector<64x32xbf16>, vector<16x32xf32> -> vector<16x32xf32>
    %c0_64 = arith.constant 0 : index
    %c0_65 = arith.constant 0 : index
    %146 = vector.load %arg11[%c0_64, %c0_65] : memref<1x32xf32, #tpu.memory_space<vmem>>, vector<1x32xf32>
    %147 = vector.broadcast %146 : vector<1x32xf32> to vector<16x32xf32>
    %148 = arith.addf %145, %147 : vector<16x32xf32>
    %149 = arith.addf %148, %134 : vector<16x32xf32>
    %c0_66 = arith.constant 0 : index
    %c0_67 = arith.constant 0 : index
    %150 = vector.load %arg12[%c0_66, %c0_67] : memref<1x32xf32, #tpu.memory_space<vmem>>, vector<1x32xf32>
    %c0_68 = arith.constant 0 : index
    %c0_69 = arith.constant 0 : index
    %151 = vector.load %arg13[%c0_68, %c0_69] : memref<1x32xf32, #tpu.memory_space<vmem>>, vector<1x32xf32>
    %cst_70 = arith.constant dense<0.000000e+00> : vector<16xf32>
    %152 = vector.multi_reduction <add>, %149, %cst_70 [1] : vector<16x32xf32> to vector<16xf32>
    %153 = vector.shape_cast %152 : vector<16xf32> to vector<16x1xf32>
    %cst_71 = arith.constant 3.200000e+01 : f32
    %154 = vector.broadcast %cst_71 : f32 to vector<16x1xf32>
    %155 = arith.divf %153, %154 : vector<16x1xf32>
    %156 = vector.broadcast %155 : vector<16x1xf32> to vector<16x32xf32>
    %157 = arith.subf %149, %156 : vector<16x32xf32>
    %158 = arith.mulf %157, %157 : vector<16x32xf32>
    %cst_72 = arith.constant dense<0.000000e+00> : vector<16xf32>
    %159 = vector.multi_reduction <add>, %158, %cst_72 [1] : vector<16x32xf32> to vector<16xf32>
    %160 = vector.shape_cast %159 : vector<16xf32> to vector<16x1xf32>
    %cst_73 = arith.constant 3.200000e+01 : f32
    %161 = vector.broadcast %cst_73 : f32 to vector<16x1xf32>
    %162 = arith.divf %160, %161 : vector<16x1xf32>
    %cst_74 = arith.constant 9.99999974E-6 : f32
    %163 = vector.broadcast %cst_74 : f32 to vector<16x1xf32>
    %164 = arith.addf %162, %163 : vector<16x1xf32>
    %165 = math.rsqrt %164 : vector<16x1xf32>
    %166 = vector.broadcast %165 : vector<16x1xf32> to vector<16x32xf32>
    %167 = arith.mulf %157, %166 : vector<16x32xf32>
    %168 = vector.broadcast %150 : vector<1x32xf32> to vector<16x32xf32>
    %169 = arith.mulf %167, %168 : vector<16x32xf32>
    %170 = vector.broadcast %151 : vector<1x32xf32> to vector<16x32xf32>
    %171 = arith.addf %169, %170 : vector<16x32xf32>
    %c0_75 = arith.constant 0 : index
    %c0_76 = arith.constant 0 : index
    %172 = vector.load %arg14[%c0_75, %c0_76] : memref<16x32xf32, #tpu.memory_space<vmem>>, vector<16x32xf32>
    tpu.vector_store %arg14[%c0_75, %c0_76], %171 {strides = array<i32>} : memref<16x32xf32, #tpu.memory_space<vmem>>, vector<16x32xf32>,
    return
  }
}

</mosaic_0001>

<llo_original>
// kernel: tpu_custom_call.1
$region0: #{tpu_custom_call.1}
  #allocation0 [shape = 'u32[]', space=smem, size = 0x4, offset = 0x4, fixed_abs, tag = 'smem constant byte address 0x4 - core index']
  #allocation1 [shape = 'u32[144,128]{1,0:T(1,128)}', space=vmem, size = 0x12000, scoped, tag = 'internal scratch']
  #allocation2 [shape = 'f32[16,32]{1,0:T(8,128)}', space=vmem, size = 0x2000, scoped, tag = 'scratch operand']
  %s0 = inlined_call_operand.vmem [shape: f32[16,32], index: 0, kind: input, shape index: {}]
  %s1 = inlined_call_operand.hbm [shape: f32[8,8], index: 1, kind: input, shape index: {}]
  %s2 = inlined_call_operand.vmem [shape: bf16[32,128], index: 2, kind: input, shape index: {}]
  %s3 = inlined_call_operand.vmem [shape: f32[1,128], index: 3, kind: input, shape index: {}]
  %s4 = inlined_call_operand.vmem [shape: bf16[32,32], index: 4, kind: input, shape index: {}]
  %s5 = inlined_call_operand.vmem [shape: f32[1,32], index: 5, kind: input, shape index: {}]
  %s6 = inlined_call_operand.vmem [shape: f32[1,32], index: 6, kind: input, shape index: {}]
  %s7 = inlined_call_operand.vmem [shape: f32[1,32], index: 7, kind: input, shape index: {}]
  %s8 = inlined_call_operand.hbm [shape: bf16[32,64], index: 8, kind: input, shape index: {}]
  %s9 = inlined_call_operand.vmem [shape: f32[1,64], index: 9, kind: input, shape index: {}]
  %s10 = inlined_call_operand.vmem [shape: bf16[64,32], index: 10, kind: input, shape index: {}]
  %s11 = inlined_call_operand.vmem [shape: f32[1,32], index: 11, kind: input, shape index: {}]
  %s12 = inlined_call_operand.vmem [shape: f32[1,32], index: 12, kind: input, shape index: {}]
  %s13 = inlined_call_operand.vmem [shape: f32[1,32], index: 13, kind: input, shape index: {}]
  %s14 = inlined_call_operand.hbm [shape: f32[16,32], index: 14, kind: output, shape index: {}]
  %s15 = sld [smem:[#allocation0]]
  $region74: #{tpu_custom_call.1} parent=0
    _
  %s17 = ssub.s32 1, %s15
  %s18 = scalar_select 0, %s17, %s15
  $region1: #{tpu_custom_call.1} parent=0
    #allocation3 [shape = 'u8[4096]{0}', space=vmem, size = 0x1000, scoped, tag = 'input window, operand 1, single buffered']
    #allocation4 [shape = 's32[1]{0}', space=sflag, size = 0x4, scoped, tag = 'scoped memory for tpu_custom_call.1']
    #allocation5 [shape = 's32[1]{0}', space=sflag, size = 0x4, scoped, tag = 'scoped memory for tpu_custom_call.1']
    #allocation6 [shape = 'u8[8192]{0}', space=vmem, size = 0x2000, scoped, tag = 'input window, operand 8, single buffered']
    #allocation7 [shape = 's32[1]{0}', space=sflag, size = 0x4, scoped, tag = 'scoped memory for tpu_custom_call.1']
    #allocation8 [shape = 'u8[8192]{0}', space=vmem, size = 0x2000, scoped, tag = 'output window, operand 0, single buffered']
    %19 = vsyncpa [#allocation4], 0
    %20 = vsyncpa [#allocation7], 0
    %21 = vsyncpa [#allocation5], 0
    // Predicated region
    $region2: #{tpu_custom_call.1} parent=1 // pred_check
      _
    $region3: #{tpu_custom_call.1} parent=1 // pred_check_branch
      %23 = sbr.rel (0) target = $region5
    $region4: #{tpu_custom_call.1} parent=1 // pred_region
      _
    $region5: #{tpu_custom_call.1} parent=1 // pred_fallthru
      _
    // Predicated region
    $region6: #{tpu_custom_call.1} parent=1 // pred_check
      _
    $region7: #{tpu_custom_call.1} parent=1 // pred_check_branch
      %25 = sbr.rel (0) target = $region9
    $region8: #{tpu_custom_call.1} parent=1 // pred_region
      %s27 = ssub.s32 128, 128
      %28 = vsyncadd [#allocation4], %s27
      %s30 = sshll.u32 [#allocation3], 4
      %s31 = int_to_ptr.vmem [resolvable:$true] %s30
      %33 = dma.hbm_to_vmem [thread:$0]  %s1, 128, %s31, [#allocation4]
    $region9: #{tpu_custom_call.1} parent=1 // pred_fallthru
      _
    // Predicated region
    $region10: #{tpu_custom_call.1} parent=1 // pred_check
      _
    $region11: #{tpu_custom_call.1} parent=1 // pred_check_branch
      %35 = sbr.rel (0) target = $region13
    $region12: #{tpu_custom_call.1} parent=1 // pred_region
      _
    $region13: #{tpu_custom_call.1} parent=1 // pred_fallthru
      _
    // Predicated region
    $region14: #{tpu_custom_call.1} parent=1 // pred_check
      _
    $region15: #{tpu_custom_call.1} parent=1 // pred_check_branch
      %37 = sbr.rel (0) target = $region17
    $region16: #{tpu_custom_call.1} parent=1 // pred_region
      _
    $region17: #{tpu_custom_call.1} parent=1 // pred_fallthru
      _
    // Predicated region
    $region18: #{tpu_custom_call.1} parent=1 // pred_check
      _
    $region19: #{tpu_custom_call.1} parent=1 // pred_check_branch
      %39 = sbr.rel (0) target = $region21
    $region20: #{tpu_custom_call.1} parent=1 // pred_region
      _
    $region21: #{tpu_custom_call.1} parent=1 // pred_fallthru
      _
    // Predicated region
    $region22: #{tpu_custom_call.1} parent=1 // pred_check
      _
    $region23: #{tpu_custom_call.1} parent=1 // pred_check_branch
      %41 = sbr.rel (0) target = $region25
    $region24: #{tpu_custom_call.1} parent=1 // pred_region
      _
    $region25: #{tpu_custom_call.1} parent=1 // pred_fallthru
      _
    // Predicated region
    $region26: #{tpu_custom_call.1} parent=1 // pred_check
      _
    $region27: #{tpu_custom_call.1} parent=1 // pred_check_branch
      %43 = sbr.rel (0) target = $region29
    $region28: #{tpu_custom_call.1} parent=1 // pred_region
      _
    $region29: #{tpu_custom_call.1} parent=1 // pred_fallthru
      _
    // Predicated region
    $region30: #{tpu_custom_call.1} parent=1 // pred_check
      _
    $region31: #{tpu_custom_call.1} parent=1 // pred_check_branch
      %45 = sbr.rel (0) target = $region33
    $region32: #{tpu_custom_call.1} parent=1 // pred_region
      _
    $region33: #{tpu_custom_call.1} parent=1 // pred_fallthru
      _
    // Predicated region
    $region34: #{tpu_custom_call.1} parent=1 // pred_check
      _
    $region35: #{tpu_custom_call.1} parent=1 // pred_check_branch
      %47 = sbr.rel (0) target = $region37
    $region36: #{tpu_custom_call.1} parent=1 // pred_region
      %s49 = ssub.s32 256, 256
      %50 = vsyncadd [#allocation7], %s49
      %s51 = sshll.u32 [#allocation6], 4
      %s52 = int_to_ptr.vmem [resolvable:$true] %s51
      %57 = dma.hbm_to_vmem [thread:$0]  %s8, 256, %s52, [#allocation7], 64, 64, 4
    $region37: #{tpu_custom_call.1} parent=1 // pred_fallthru
      _
    // Predicated region
    $region38: #{tpu_custom_call.1} parent=1 // pred_check
      _
    $region39: #{tpu_custom_call.1} parent=1 // pred_check_branch
      %59 = sbr.rel (0) target = $region41
    $region40: #{tpu_custom_call.1} parent=1 // pred_region
      _
    $region41: #{tpu_custom_call.1} parent=1 // pred_fallthru
      _
    // Predicated region
    $region42: #{tpu_custom_call.1} parent=1 // pred_check
      _
    $region43: #{tpu_custom_call.1} parent=1 // pred_check_branch
      %61 = sbr.rel (0) target = $region45
    $region44: #{tpu_custom_call.1} parent=1 // pred_region
      _
    $region45: #{tpu_custom_call.1} parent=1 // pred_fallthru
      _
    // Predicated region
    $region46: #{tpu_custom_call.1} parent=1 // pred_check
      _
    $region47: #{tpu_custom_call.1} parent=1 // pred_check_branch
      %63 = sbr.rel (0) target = $region49
    $region48: #{tpu_custom_call.1} parent=1 // pred_region
      _
    $region49: #{tpu_custom_call.1} parent=1 // pred_fallthru
      _
    // Predicated region
    $region50: #{tpu_custom_call.1} parent=1 // pred_check
      _
    $region51: #{tpu_custom_call.1} parent=1 // pred_check_branch
      %65 = sbr.rel (0) target = $region53
    $region52: #{tpu_custom_call.1} parent=1 // pred_region
      _
    $region53: #{tpu_custom_call.1} parent=1 // pred_fallthru
      _
    // Predicated region
    $region54: #{tpu_custom_call.1} parent=1 // pred_check
      _
    $region55: #{tpu_custom_call.1} parent=1 // pred_check_branch
      %67 = sbr.rel (0) target = $region57
    $region56: #{tpu_custom_call.1} parent=1 // pred_region
      _
    $region57: #{tpu_custom_call.1} parent=1 // pred_fallthru
      _
    // Predicated region
    $region58: #{tpu_custom_call.1} parent=1 // pred_check
      _
    $region59: #{tpu_custom_call.1} parent=1 // pred_check_branch
      %69 = sbr.rel (0) target = $region61
    $region60: #{tpu_custom_call.1} parent=1 // pred_region
      %70 = dma.done [#allocation4], 128
    $region61: #{tpu_custom_call.1} parent=1 // pred_fallthru
      _
    // Predicated region
    $region62: #{tpu_custom_call.1} parent=1 // pred_check
      _
    $region63: #{tpu_custom_call.1} parent=1 // pred_check_branch
      %72 = sbr.rel (0) target = $region65
    $region64: #{tpu_custom_call.1} parent=1 // pred_region
      %73 = dma.done [#allocation7], 256
    $region65: #{tpu_custom_call.1} parent=1 // pred_fallthru
      _
    %v75 = vld [vmem:[%s0] sm:$0xff]
    %v76 = vld [vmem:[%s0 + $0x8] sm:$0xff]
    %v77 = vld [vmem:[#allocation3] sm:$0xff]
    %v78 = vpack.c.bf16 %v76, %v75
    %v79 = vld [vmem:[%s2] sm:$0xf]
    %v80 = vld [vmem:[%s2 + $0x4] sm:$0xf]
    %v81 = vld [vmem:[%s2 + $0x8] sm:$0xf]
    %v82 = vld [vmem:[%s2 + $0xc] sm:$0xf]
    %v83 = vld [vmem:[%s3] sm:$0x1]
    %v85 = vlaneseq
    %v86 = vshrl.u32 %v85, 7
    %v87 = vsub.s32 0, %v86
    %v88 = vrot.slane %v83, %v87
    %v94 = vunpack.c.l.b16 %v79
    %v95 = vunpack.c.l.b16 %v80
    %v96 = vunpack.c.l.b16 %v81
    %v97 = vunpack.c.l.b16 %v82
    %v98 = vpack.c.b16 %v95, %v94
    %v99 = vpack.c.b16 %v97, %v96
    %vm102 = vcmask 261120
    %v104 = vsel %vm102, %v78, 0
    %106 = vmatprep.subr.bf16.mxu0 0
    %107 = vmatpush1.bf16.msra.mxu0 %v98
    %108 = vmatprep.subr.bf16.mxu0 0
    %109 = vmatpush1.bf16.msra.mxu0 %v99
    %110 = vmatprep.subr.bf16.mxu0 0
    %111 = vmatpush1.bf16.msra.mxu0 0
    %112 = vmatprep.subr.bf16.mxu0 0
    %113 = vmatpush1.bf16.msra.mxu0 0
    %114 = vmatprep.subr.bf16.mxu0 0
    %115 = vmatpush1.bf16.msra.mxu0 0
    %116 = vmatprep.subr.bf16.mxu0 0
    %117 = vmatpush1.bf16.msra.mxu0 0
    %118 = vmatprep.subr.bf16.mxu0 0
    %119 = vmatpush1.bf16.msra.mxu0 0
    %120 = vmatprep.subr.bf16.mxu0 0
    %121 = vmatpush1.bf16.msra.mxu0 0
    %122 = vmatprep.subr.bf16.mxu0 0
    %123 = vmatpush1.bf16.msra.mxu0 0
    %124 = vmatprep.subr.bf16.mxu0 0
    %125 = vmatpush1.bf16.msra.mxu0 0
    %126 = vmatprep.subr.bf16.mxu0 0
    %127 = vmatpush1.bf16.msra.mxu0 0
    %128 = vmatprep.subr.bf16.mxu0 0
    %129 = vmatpush1.bf16.msra.mxu0 0
    %130 = vmatprep.subr.bf16.mxu0 0
    %131 = vmatpush1.bf16.msra.mxu0 0
    %132 = vmatprep.subr.bf16.mxu0 0
    %133 = vmatpush1.bf16.msra.mxu0 0
    %134 = vmatprep.subr.bf16.mxu0 0
    %135 = vmatpush1.bf16.msra.mxu0 0
    %136 = vmatprep.subr.bf16.mxu0 0
    %137 = vmatpush1.bf16.msra.mxu0 0
    %138 = vmatprep.mubr.bf16.mxu0 0
    %139 = vmatmul.mubr.bf16.gmra.mrb[0].mxu0 %v104
    %v140 = vpop.f32.mrb[0].mxu0
    %v141 = vadd.f32 %v88, %v140
    %v142 = vpop.f32.mrb[0].mxu0
    %v143 = vpop.f32.mrb[0].mxu0
    %v144 = vadd.f32 %v88, %v143
    %v145 = vpop.f32.mrb[0].mxu0
    %146 = vdwg.mxu0
    %148 = vrot.lane.b32.xlu0 %v141, 96
    %v149 = vpop.permute.xlu0 %148
    %vm150 = vcmask 64512
    %v151 = vsel %vm150, %v141, 0
    %v153 = vsel %vm150, %v149, 0
    %155 = vmatprep.subr.mxu0 0.0
    %156 = vmatpush1.xpose.msra.mxu0 %v153
    %157 = vmatprep.subr.mxu0 0.0
    %158 = vmatpush1.xpose.msra.mxu0 0.0
    %159 = vmatprep.subr.mxu0 0.0
    %160 = vmatpush1.xpose.msra.mxu0 0.0
    %161 = vmatprep.subr.mxu0 0.0
    %162 = vmatpush1.xpose.msra.mxu0 0.0
    %163 = vmatprep.subr.mxu0 0.0
    %164 = vmatpush1.xpose.msra.mxu0 0.0
    %165 = vmatprep.subr.mxu0 0.0
    %166 = vmatpush1.xpose.msra.mxu0 0.0
    %167 = vmatprep.subr.mxu0 0.0
    %168 = vmatpush1.xpose.msra.mxu0 0.0
    %169 = vmatprep.subr.mxu0 0.0
    %170 = vmatpush1.xpose.msra.mxu0 0.0
    %171 = vmatprep.subr.mxu0 0.0
    %172 = vmatpush1.xpose.msra.mxu0 0.0
    %173 = vmatprep.subr.mxu0 0.0
    %174 = vmatpush1.xpose.msra.mxu0 0.0
    %175 = vmatprep.subr.mxu0 0.0
    %176 = vmatpush1.xpose.msra.mxu0 0.0
    %177 = vmatprep.subr.mxu0 0.0
    %178 = vmatpush1.xpose.msra.mxu0 0.0
    %179 = vmatprep.subr.mxu0 0.0
    %180 = vmatpush1.xpose.msra.mxu0 0.0
    %181 = vmatprep.subr.mxu0 0.0
    %182 = vmatpush1.xpose.msra.mxu0 0.0
    %183 = vmatprep.subr.mxu0 0.0
    %184 = vmatpush1.xpose.msra.mxu0 0.0
    %185 = vmatprep.subr.mxu0 0.0
    %186 = vmatpush1.xpose.msra.mxu0 0.0
    %187 = vmatprep.subr.mxu0 0.0
    %188 = vmatpush1.xpose.msra.mxu0 0.0
    %189 = vmatprep.subr.mxu0 0.0
    %190 = vmatpush1.xpose.msra.mxu0 0.0
    %191 = vmatprep.subr.mxu0 0.0
    %192 = vmatpush1.xpose.msra.mxu0 0.0
    %193 = vmatprep.subr.mxu0 0.0
    %194 = vmatpush1.xpose.msra.mxu0 0.0
    %195 = vmatprep.subr.mxu0 0.0
    %196 = vmatpush1.xpose.msra.mxu0 0.0
    %197 = vmatprep.subr.mxu0 0.0
    %198 = vmatpush1.xpose.msra.mxu0 0.0
    %199 = vmatprep.subr.mxu0 0.0
    %200 = vmatpush1.xpose.msra.mxu0 0.0
    %201 = vmatprep.subr.mxu0 0.0
    %202 = vmatpush1.xpose.msra.mxu0 0.0
    %203 = vmatprep.subr.mxu0 0.0
    %204 = vmatpush1.xpose.msra.mxu0 0.0
    %205 = vmatprep.subr.mxu0 0.0
    %206 = vmatpush1.xpose.msra.mxu0 0.0
    %207 = vmatprep.subr.mxu0 0.0
    %208 = vmatpush1.xpose.msra.mxu0 0.0
    %209 = vmatprep.subr.mxu0 0.0
    %210 = vmatpush1.xpose.msra.mxu0 0.0
    %211 = vmatprep.subr.mxu0 0.0
    %212 = vmatpush1.xpose.msra.mxu0 0.0
    %213 = vmatprep.subr.mxu0 0.0
    %214 = vmatpush1.xpose.msra.mxu0 0.0
    %215 = vmatprep.subr.mxu0 0.0
    %216 = vmatpush1.xpose.msra.mxu0 0.0
    %217 = vmatprep.subr.mxu0 0.0
    %218 = vmatpush1.xpose.msra.mxu0 0.0
    %219 = vmatprep.mubr.f32.mxu0 0.0
    %220 = vmatmul.mubr.f32.gmra.mrb[0].mxu0 %v151
    %v221 = vpop.f32.mrb[0].mxu0
    %v222 = vadd.f32 0.0, %v221
    %v223 = vpop.f32.mrb[0].mxu0
    %224 = vdwg.mxu0
    %225 = vrot.lane.b32.xlu0 %v141, 120
    %v226 = vpop.permute.xlu0 %225
    %227 = vrot.lane.b32.xlu0 %v141, 88
    %v228 = vpop.permute.xlu0 %227
    %v229 = vsel %vm150, %v226, 0
    %v231 = vsel %vm150, %v228, 0
    %233 = vmatprep.subr.mxu0 0.0
    %234 = vmatpush1.xpose.msra.mxu0 %v231
    %235 = vmatprep.subr.mxu0 0.0
    %236 = vmatpush1.xpose.msra.mxu0 0.0
    %237 = vmatprep.subr.mxu0 0.0
    %238 = vmatpush1.xpose.msra.mxu0 0.0
    %239 = vmatprep.subr.mxu0 0.0
    %240 = vmatpush1.xpose.msra.mxu0 0.0
    %241 = vmatprep.subr.mxu0 0.0
    %242 = vmatpush1.xpose.msra.mxu0 0.0
    %243 = vmatprep.subr.mxu0 0.0
    %244 = vmatpush1.xpose.msra.mxu0 0.0
    %245 = vmatprep.subr.mxu0 0.0
    %246 = vmatpush1.xpose.msra.mxu0 0.0
    %247 = vmatprep.subr.mxu0 0.0
    %248 = vmatpush1.xpose.msra.mxu0 0.0
    %249 = vmatprep.subr.mxu0 0.0
    %250 = vmatpush1.xpose.msra.mxu0 0.0
    %251 = vmatprep.subr.mxu0 0.0
    %252 = vmatpush1.xpose.msra.mxu0 0.0
    %253 = vmatprep.subr.mxu0 0.0
    %254 = vmatpush1.xpose.msra.mxu0 0.0
    %255 = vmatprep.subr.mxu0 0.0
    %256 = vmatpush1.xpose.msra.mxu0 0.0
    %257 = vmatprep.subr.mxu0 0.0
    %258 = vmatpush1.xpose.msra.mxu0 0.0
    %259 = vmatprep.subr.mxu0 0.0
    %260 = vmatpush1.xpose.msra.mxu0 0.0
    %261 = vmatprep.subr.mxu0 0.0
    %262 = vmatpush1.xpose.msra.mxu0 0.0
    %263 = vmatprep.subr.mxu0 0.0
    %264 = vmatpush1.xpose.msra.mxu0 0.0
    %265 = vmatprep.subr.mxu0 0.0
    %266 = vmatpush1.xpose.msra.mxu0 0.0
    %267 = vmatprep.subr.mxu0 0.0
    %268 = vmatpush1.xpose.msra.mxu0 0.0
    %269 = vmatprep.subr.mxu0 0.0
    %270 = vmatpush1.xpose.msra.mxu0 0.0
    %271 = vmatprep.subr.mxu0 0.0
    %272 = vmatpush1.xpose.msra.mxu0 0.0
    %273 = vmatprep.subr.mxu0 0.0
    %274 = vmatpush1.xpose.msra.mxu0 0.0
    %275 = vmatprep.subr.mxu0 0.0
    %276 = vmatpush1.xpose.msra.mxu0 0.0
    %277 = vmatprep.subr.mxu0 0.0
    %278 = vmatpush1.xpose.msra.mxu0 0.0
    %279 = vmatprep.subr.mxu0 0.0
    %280 = vmatpush1.xpose.msra.mxu0 0.0
    %281 = vmatprep.subr.mxu0 0.0
    %282 = vmatpush1.xpose.msra.mxu0 0.0
    %283 = vmatprep.subr.mxu0 0.0
    %284 = vmatpush1.xpose.msra.mxu0 0.0
    %285 = vmatprep.subr.mxu0 0.0
    %286 = vmatpush1.xpose.msra.mxu0 0.0
    %287 = vmatprep.subr.mxu0 0.0
    %288 = vmatpush1.xpose.msra.mxu0 0.0
    %289 = vmatprep.subr.mxu0 0.0
    %290 = vmatpush1.xpose.msra.mxu0 0.0
    %291 = vmatprep.subr.mxu0 0.0
    %292 = vmatpush1.xpose.msra.mxu0 0.0
    %293 = vmatprep.subr.mxu0 0.0
    %294 = vmatpush1.xpose.msra.mxu0 0.0
    %295 = vmatprep.subr.mxu0 0.0
    %296 = vmatpush1.xpose.msra.mxu0 0.0
    %297 = vmatprep.mubr.f32.mxu0 0.0
    %298 = vmatmul.mubr.f32.gmra.mrb[0].mxu0 %v229
    %v299 = vpop.f32.mrb[0].mxu0
    %v300 = vadd.f32 0.0, %v299
    %v301 = vpop.f32.mrb[0].mxu0
    %302 = vdwg.mxu0
    %303 = vrot.lane.b32.xlu0 %v141, 112
    %v304 = vpop.permute.xlu0 %303
    %305 = vrot.lane.b32.xlu0 %v141, 80
    %v306 = vpop.permute.xlu0 %305
    %v307 = vsel %vm150, %v304, 0
    %v309 = vsel %vm150, %v306, 0
    %311 = vmatprep.subr.mxu0 0.0
    %312 = vmatpush1.xpose.msra.mxu0 %v309
    %313 = vmatprep.subr.mxu0 0.0
    %314 = vmatpush1.xpose.msra.mxu0 0.0
    %315 = vmatprep.subr.mxu0 0.0
    %316 = vmatpush1.xpose.msra.mxu0 0.0
    %317 = vmatprep.subr.mxu0 0.0
    %318 = vmatpush1.xpose.msra.mxu0 0.0
    %319 = vmatprep.subr.mxu0 0.0
    %320 = vmatpush1.xpose.msra.mxu0 0.0
    %321 = vmatprep.subr.mxu0 0.0
    %322 = vmatpush1.xpose.msra.mxu0 0.0
    %323 = vmatprep.subr.mxu0 0.0
    %324 = vmatpush1.xpose.msra.mxu0 0.0
    %325 = vmatprep.subr.mxu0 0.0
    %326 = vmatpush1.xpose.msra.mxu0 0.0
    %327 = vmatprep.subr.mxu0 0.0
    %328 = vmatpush1.xpose.msra.mxu0 0.0
    %329 = vmatprep.subr.mxu0 0.0
    %330 = vmatpush1.xpose.msra.mxu0 0.0
    %331 = vmatprep.subr.mxu0 0.0
    %332 = vmatpush1.xpose.msra.mxu0 0.0
    %333 = vmatprep.subr.mxu0 0.0
    %334 = vmatpush1.xpose.msra.mxu0 0.0
    %335 = vmatprep.subr.mxu0 0.0
    %336 = vmatpush1.xpose.msra.mxu0 0.0
    %337 = vmatprep.subr.mxu0 0.0
    %338 = vmatpush1.xpose.msra.mxu0 0.0
    %339 = vmatprep.subr.mxu0 0.0
    %340 = vmatpush1.xpose.msra.mxu0 0.0
    %341 = vmatprep.subr.mxu0 0.0
    %342 = vmatpush1.xpose.msra.mxu0 0.0
    %343 = vmatprep.subr.mxu0 0.0
    %344 = vmatpush1.xpose.msra.mxu0 0.0
    %345 = vmatprep.subr.mxu0 0.0
    %346 = vmatpush1.xpose.msra.mxu0 0.0
    %347 = vmatprep.subr.mxu0 0.0
    %348 = vmatpush1.xpose.msra.mxu0 0.0
    %349 = vmatprep.subr.mxu0 0.0
    %350 = vmatpush1.xpose.msra.mxu0 0.0
    %351 = vmatprep.subr.mxu0 0.0
    %352 = vmatpush1.xpose.msra.mxu0 0.0
    %353 = vmatprep.subr.mxu0 0.0
    %354 = vmatpush1.xpose.msra.mxu0 0.0
    %355 = vmatprep.subr.mxu0 0.0
    %356 = vmatpush1.xpose.msra.mxu0 0.0
    %357 = vmatprep.subr.mxu0 0.0
    %358 = vmatpush1.xpose.msra.mxu0 0.0
    %359 = vmatprep.subr.mxu0 0.0
    %360 = vmatpush1.xpose.msra.mxu0 0.0
    %361 = vmatprep.subr.mxu0 0.0
    %362 = vmatpush1.xpose.msra.mxu0 0.0
    %363 = vmatprep.subr.mxu0 0.0
    %364 = vmatpush1.xpose.msra.mxu0 0.0
    %365 = vmatprep.subr.mxu0 0.0
    %366 = vmatpush1.xpose.msra.mxu0 0.0
    %367 = vmatprep.subr.mxu0 0.0
    %368 = vmatpush1.xpose.msra.mxu0 0.0
    %369 = vmatprep.subr.mxu0 0.0
    %370 = vmatpush1.xpose.msra.mxu0 0.0
    %371 = vmatprep.subr.mxu0 0.0
    %372 = vmatpush1.xpose.msra.mxu0 0.0
    %373 = vmatprep.subr.mxu0 0.0
    %374 = vmatpush1.xpose.msra.mxu0 0.0
    %375 = vmatprep.mubr.f32.mxu0 0.0
    %376 = vmatmul.mubr.f32.gmra.mrb[0].mxu0 %v307
    %v377 = vpop.f32.mrb[0].mxu0
    %v378 = vadd.f32 0.0, %v377
    %v379 = vpop.f32.mrb[0].mxu0
    %380 = vdwg.mxu0
    %381 = vrot.lane.b32.xlu0 %v141, 104
    %v382 = vpop.permute.xlu0 %381
    %383 = vrot.lane.b32.xlu0 %v141, 72
    %v384 = vpop.permute.xlu0 %383
    %v385 = vsel %vm150, %v382, 0
    %v387 = vsel %vm150, %v384, 0
    %389 = vmatprep.subr.mxu0 0.0
    %390 = vmatpush1.xpose.msra.mxu0 %v387
    %391 = vmatprep.subr.mxu0 0.0
    %392 = vmatpush1.xpose.msra.mxu0 0.0
    %393 = vmatprep.subr.mxu0 0.0
    %394 = vmatpush1.xpose.msra.mxu0 0.0
    %395 = vmatprep.subr.mxu0 0.0
    %396 = vmatpush1.xpose.msra.mxu0 0.0
    %397 = vmatprep.subr.mxu0 0.0
    %398 = vmatpush1.xpose.msra.mxu0 0.0
    %399 = vmatprep.subr.mxu0 0.0
    %400 = vmatpush1.xpose.msra.mxu0 0.0
    %401 = vmatprep.subr.mxu0 0.0
    %402 = vmatpush1.xpose.msra.mxu0 0.0
    %403 = vmatprep.subr.mxu0 0.0
    %404 = vmatpush1.xpose.msra.mxu0 0.0
    %405 = vmatprep.subr.mxu0 0.0
    %406 = vmatpush1.xpose.msra.mxu0 0.0
    %407 = vmatprep.subr.mxu0 0.0
    %408 = vmatpush1.xpose.msra.mxu0 0.0
    %409 = vmatprep.subr.mxu0 0.0
    %410 = vmatpush1.xpose.msra.mxu0 0.0
    %411 = vmatprep.subr.mxu0 0.0
    %412 = vmatpush1.xpose.msra.mxu0 0.0
    %413 = vmatprep.subr.mxu0 0.0
    %414 = vmatpush1.xpose.msra.mxu0 0.0
    %415 = vmatprep.subr.mxu0 0.0
    %416 = vmatpush1.xpose.msra.mxu0 0.0
    %417 = vmatprep.subr.mxu0 0.0
    %418 = vmatpush1.xpose.msra.mxu0 0.0
    %419 = vmatprep.subr.mxu0 0.0
    %420 = vmatpush1.xpose.msra.mxu0 0.0
    %421 = vmatprep.subr.mxu0 0.0
    %422 = vmatpush1.xpose.msra.mxu0 0.0
    %423 = vmatprep.subr.mxu0 0.0
    %424 = vmatpush1.xpose.msra.mxu0 0.0
    %425 = vmatprep.subr.mxu0 0.0
    %426 = vmatpush1.xpose.msra.mxu0 0.0
    %427 = vmatprep.subr.mxu0 0.0
    %428 = vmatpush1.xpose.msra.mxu0 0.0
    %429 = vmatprep.subr.mxu0 0.0
    %430 = vmatpush1.xpose.msra.mxu0 0.0
    %431 = vmatprep.subr.mxu0 0.0
    %432 = vmatpush1.xpose.msra.mxu0 0.0
    %433 = vmatprep.subr.mxu0 0.0
    %434 = vmatpush1.xpose.msra.mxu0 0.0
    %435 = vmatprep.subr.mxu0 0.0
    %436 = vmatpush1.xpose.msra.mxu0 0.0
    %437 = vmatprep.subr.mxu0 0.0
    %438 = vmatpush1.xpose.msra.mxu0 0.0
    %439 = vmatprep.subr.mxu0 0.0
    %440 = vmatpush1.xpose.msra.mxu0 0.0
    %441 = vmatprep.subr.mxu0 0.0
    %442 = vmatpush1.xpose.msra.mxu0 0.0
    %443 = vmatprep.subr.mxu0 0.0
    %444 = vmatpush1.xpose.msra.mxu0 0.0
    %445 = vmatprep.subr.mxu0 0.0
    %446 = vmatpush1.xpose.msra.mxu0 0.0
    %447 = vmatprep.subr.mxu0 0.0
    %448 = vmatpush1.xpose.msra.mxu0 0.0
    %449 = vmatprep.subr.mxu0 0.0
    %450 = vmatpush1.xpose.msra.mxu0 0.0
    %451 = vmatprep.subr.mxu0 0.0
    %452 = vmatpush1.xpose.msra.mxu0 0.0
    %453 = vmatprep.mubr.f32.mxu0 0.0
    %454 = vmatmul.mubr.f32.gmra.mrb[0].mxu0 %v385
    %v455 = vpop.f32.mrb[0].mxu0
    %v456 = vadd.f32 0.0, %v455
    %v457 = vpop.f32.mrb[0].mxu0
    %458 = vdwg.mxu0
    %460 = vrot.lane.b32.xlu0 %v144, 96
    %v461 = vpop.permute.xlu0 %460
    %v462 = vsel %vm150, %v144, 0
    %v464 = vsel %vm150, %v461, 0
    %466 = vmatprep.subr.mxu0 0.0
    %467 = vmatpush1.xpose.msra.mxu0 %v464
    %468 = vmatprep.subr.mxu0 0.0
    %469 = vmatpush1.xpose.msra.mxu0 0.0
    %470 = vmatprep.subr.mxu0 0.0
    %471 = vmatpush1.xpose.msra.mxu0 0.0
    %472 = vmatprep.subr.mxu0 0.0
    %473 = vmatpush1.xpose.msra.mxu0 0.0
    %474 = vmatprep.subr.mxu0 0.0
    %475 = vmatpush1.xpose.msra.mxu0 0.0
    %476 = vmatprep.subr.mxu0 0.0
    %477 = vmatpush1.xpose.msra.mxu0 0.0
    %478 = vmatprep.subr.mxu0 0.0
    %479 = vmatpush1.xpose.msra.mxu0 0.0
    %480 = vmatprep.subr.mxu0 0.0
    %481 = vmatpush1.xpose.msra.mxu0 0.0
    %482 = vmatprep.subr.mxu0 0.0
    %483 = vmatpush1.xpose.msra.mxu0 0.0
    %484 = vmatprep.subr.mxu0 0.0
    %485 = vmatpush1.xpose.msra.mxu0 0.0
    %486 = vmatprep.subr.mxu0 0.0
    %487 = vmatpush1.xpose.msra.mxu0 0.0
    %488 = vmatprep.subr.mxu0 0.0
    %489 = vmatpush1.xpose.msra.mxu0 0.0
    %490 = vmatprep.subr.mxu0 0.0
    %491 = vmatpush1.xpose.msra.mxu0 0.0
    %492 = vmatprep.subr.mxu0 0.0
    %493 = vmatpush1.xpose.msra.mxu0 0.0
    %494 = vmatprep.subr.mxu0 0.0
    %495 = vmatpush1.xpose.msra.mxu0 0.0
    %496 = vmatprep.subr.mxu0 0.0
    %497 = vmatpush1.xpose.msra.mxu0 0.0
    %498 = vmatprep.subr.mxu0 0.0
    %499 = vmatpush1.xpose.msra.mxu0 0.0
    %500 = vmatprep.subr.mxu0 0.0
    %501 = vmatpush1.xpose.msra.mxu0 0.0
    %502 = vmatprep.subr.mxu0 0.0
    %503 = vmatpush1.xpose.msra.mxu0 0.0
    %504 = vmatprep.subr.mxu0 0.0
    %505 = vmatpush1.xpose.msra.mxu0 0.0
    %506 = vmatprep.subr.mxu0 0.0
    %507 = vmatpush1.xpose.msra.mxu0 0.0
    %508 = vmatprep.subr.mxu0 0.0
    %509 = vmatpush1.xpose.msra.mxu0 0.0
    %510 = vmatprep.subr.mxu0 0.0
    %511 = vmatpush1.xpose.msra.mxu0 0.0
    %512 = vmatprep.subr.mxu0 0.0
    %513 = vmatpush1.xpose.msra.mxu0 0.0
    %514 = vmatprep.subr.mxu0 0.0
    %515 = vmatpush1.xpose.msra.mxu0 0.0
    %516 = vmatprep.subr.mxu0 0.0
    %517 = vmatpush1.xpose.msra.mxu0 0.0
    %518 = vmatprep.subr.mxu0 0.0
    %519 = vmatpush1.xpose.msra.mxu0 0.0
    %520 = vmatprep.subr.mxu0 0.0
    %521 = vmatpush1.xpose.msra.mxu0 0.0
    %522 = vmatprep.subr.mxu0 0.0
    %523 = vmatpush1.xpose.msra.mxu0 0.0
    %524 = vmatprep.subr.mxu0 0.0
    %525 = vmatpush1.xpose.msra.mxu0 0.0
    %526 = vmatprep.subr.mxu0 0.0
    %527 = vmatpush1.xpose.msra.mxu0 0.0
    %528 = vmatprep.subr.mxu0 0.0
    %529 = vmatpush1.xpose.msra.mxu0 0.0
    %530 = vmatprep.mubr.f32.mxu0 0.0
    %531 = vmatmul.mubr.f32.gmra.mrb[0].mxu0 %v462
    %v532 = vpop.f32.mrb[0].mxu0
    %v533 = vadd.f32 0.0, %v532
    %v534 = vpop.f32.mrb[0].mxu0
    %535 = vdwg.mxu0
    %536 = vrot.lane.b32.xlu0 %v144, 120
    %v537 = vpop.permute.xlu0 %536
    %538 = vrot.lane.b32.xlu0 %v144, 88
    %v539 = vpop.permute.xlu0 %538
    %v540 = vsel %vm150, %v537, 0
    %v542 = vsel %vm150, %v539, 0
    %544 = vmatprep.subr.mxu0 0.0
    %545 = vmatpush1.xpose.msra.mxu0 %v542
    %546 = vmatprep.subr.mxu0 0.0
    %547 = vmatpush1.xpose.msra.mxu0 0.0
    %548 = vmatprep.subr.mxu0 0.0
    %549 = vmatpush1.xpose.msra.mxu0 0.0
    %550 = vmatprep.subr.mxu0 0.0
    %551 = vmatpush1.xpose.msra.mxu0 0.0
    %552 = vmatprep.subr.mxu0 0.0
    %553 = vmatpush1.xpose.msra.mxu0 0.0
    %554 = vmatprep.subr.mxu0 0.0
    %555 = vmatpush1.xpose.msra.mxu0 0.0
    %556 = vmatprep.subr.mxu0 0.0
    %557 = vmatpush1.xpose.msra.mxu0 0.0
    %558 = vmatprep.subr.mxu0 0.0
    %559 = vmatpush1.xpose.msra.mxu0 0.0
    %560 = vmatprep.subr.mxu0 0.0
    %561 = vmatpush1.xpose.msra.mxu0 0.0
    %562 = vmatprep.subr.mxu0 0.0
    %563 = vmatpush1.xpose.msra.mxu0 0.0
    %564 = vmatprep.subr.mxu0 0.0
    %565 = vmatpush1.xpose.msra.mxu0 0.0
    %566 = vmatprep.subr.mxu0 0.0
    %567 = vmatpush1.xpose.msra.mxu0 0.0
    %568 = vmatprep.subr.mxu0 0.0
    %569 = vmatpush1.xpose.msra.mxu0 0.0
    %570 = vmatprep.subr.mxu0 0.0
    %571 = vmatpush1.xpose.msra.mxu0 0.0
    %572 = vmatprep.subr.mxu0 0.0
    %573 = vmatpush1.xpose.msra.mxu0 0.0
    %574 = vmatprep.subr.mxu0 0.0
    %575 = vmatpush1.xpose.msra.mxu0 0.0
    %576 = vmatprep.subr.mxu0 0.0
    %577 = vmatpush1.xpose.msra.mxu0 0.0
    %578 = vmatprep.subr.mxu0 0.0
    %579 = vmatpush1.xpose.msra.mxu0 0.0
    %580 = vmatprep.subr.mxu0 0.0
    %581 = vmatpush1.xpose.msra.mxu0 0.0
    %582 = vmatprep.subr.mxu0 0.0
    %583 = vmatpush1.xpose.msra.mxu0 0.0
    %584 = vmatprep.subr.mxu0 0.0
    %585 = vmatpush1.xpose.msra.mxu0 0.0
    %586 = vmatprep.subr.mxu0 0.0
    %587 = vmatpush1.xpose.msra.mxu0 0.0
    %588 = vmatprep.subr.mxu0 0.0
    %589 = vmatpush1.xpose.msra.mxu0 0.0
    %590 = vmatprep.subr.mxu0 0.0
    %591 = vmatpush1.xpose.msra.mxu0 0.0
    %592 = vmatprep.subr.mxu0 0.0
    %593 = vmatpush1.xpose.msra.mxu0 0.0
    %594 = vmatprep.subr.mxu0 0.0
    %595 = vmatpush1.xpose.msra.mxu0 0.0
    %596 = vmatprep.subr.mxu0 0.0
    %597 = vmatpush1.xpose.msra.mxu0 0.0
    %598 = vmatprep.subr.mxu0 0.0
    %599 = vmatpush1.xpose.msra.mxu0 0.0
    %600 = vmatprep.subr.mxu0 0.0
    %601 = vmatpush1.xpose.msra.mxu0 0.0
    %602 = vmatprep.subr.mxu0 0.0
    %603 = vmatpush1.xpose.msra.mxu0 0.0
    %604 = vmatprep.subr.mxu0 0.0
    %605 = vmatpush1.xpose.msra.mxu0 0.0
    %606 = vmatprep.subr.mxu0 0.0
    %607 = vmatpush1.xpose.msra.mxu0 0.0
    %608 = vmatprep.mubr.f32.mxu0 0.0
    %609 = vmatmul.mubr.f32.gmra.mrb[0].mxu0 %v540
    %v610 = vpop.f32.mrb[0].mxu0
    %v611 = vadd.f32 0.0, %v610
    %v612 = vpop.f32.mrb[0].mxu0
    %613 = vdwg.mxu0
    %614 = vrot.lane.b32.xlu0 %v144, 112
    %v615 = vpop.permute.xlu0 %614
    %616 = vrot.lane.b32.xlu0 %v144, 80
    %v617 = vpop.permute.xlu0 %616
    %v618 = vsel %vm150, %v615, 0
    %v620 = vsel %vm150, %v617, 0
    %622 = vmatprep.subr.mxu0 0.0
    %623 = vmatpush1.xpose.msra.mxu0 %v620
    %624 = vmatprep.subr.mxu0 0.0
    %625 = vmatpush1.xpose.msra.mxu0 0.0
    %626 = vmatprep.subr.mxu0 0.0
    %627 = vmatpush1.xpose.msra.mxu0 0.0
    %628 = vmatprep.subr.mxu0 0.0
    %629 = vmatpush1.xpose.msra.mxu0 0.0
    %630 = vmatprep.subr.mxu0 0.0
    %631 = vmatpush1.xpose.msra.mxu0 0.0
    %632 = vmatprep.subr.mxu0 0.0
    %633 = vmatpush1.xpose.msra.mxu0 0.0
    %634 = vmatprep.subr.mxu0 0.0
    %635 = vmatpush1.xpose.msra.mxu0 0.0
    %636 = vmatprep.subr.mxu0 0.0
    %637 = vmatpush1.xpose.msra.mxu0 0.0
    %638 = vmatprep.subr.mxu0 0.0
    %639 = vmatpush1.xpose.msra.mxu0 0.0
    %640 = vmatprep.subr.mxu0 0.0
    %641 = vmatpush1.xpose.msra.mxu0 0.0
    %642 = vmatprep.subr.mxu0 0.0
    %643 = vmatpush1.xpose.msra.mxu0 0.0
    %644 = vmatprep.subr.mxu0 0.0
    %645 = vmatpush1.xpose.msra.mxu0 0.0
    %646 = vmatprep.subr.mxu0 0.0
    %647 = vmatpush1.xpose.msra.mxu0 0.0
    %648 = vmatprep.subr.mxu0 0.0
    %649 = vmatpush1.xpose.msra.mxu0 0.0
    %650 = vmatprep.subr.mxu0 0.0
    %651 = vmatpush1.xpose.msra.mxu0 0.0
    %652 = vmatprep.subr.mxu0 0.0
    %653 = vmatpush1.xpose.msra.mxu0 0.0
    %654 = vmatprep.subr.mxu0 0.0
    %655 = vmatpush1.xpose.msra.mxu0 0.0
    %656 = vmatprep.subr.mxu0 0.0
    %657 = vmatpush1.xpose.msra.mxu0 0.0
    %658 = vmatprep.subr.mxu0 0.0
    %659 = vmatpush1.xpose.msra.mxu0 0.0
    %660 = vmatprep.subr.mxu0 0.0
    %661 = vmatpush1.xpose.msra.mxu0 0.0
    %662 = vmatprep.subr.mxu0 0.0
    %663 = vmatpush1.xpose.msra.mxu0 0.0
    %664 = vmatprep.subr.mxu0 0.0
    %665 = vmatpush1.xpose.msra.mxu0 0.0
    %666 = vmatprep.subr.mxu0 0.0
    %667 = vmatpush1.xpose.msra.mxu0 0.0
    %668 = vmatprep.subr.mxu0 0.0
    %669 = vmatpush1.xpose.msra.mxu0 0.0
    %670 = vmatprep.subr.mxu0 0.0
    %671 = vmatpush1.xpose.msra.mxu0 0.0
    %672 = vmatprep.subr.mxu0 0.0
    %673 = vmatpush1.xpose.msra.mxu0 0.0
    %674 = vmatprep.subr.mxu0 0.0
    %675 = vmatpush1.xpose.msra.mxu0 0.0
    %676 = vmatprep.subr.mxu0 0.0
    %677 = vmatpush1.xpose.msra.mxu0 0.0
    %678 = vmatprep.subr.mxu0 0.0
    %679 = vmatpush1.xpose.msra.mxu0 0.0
    %680 = vmatprep.subr.mxu0 0.0
    %681 = vmatpush1.xpose.msra.mxu0 0.0
    %682 = vmatprep.subr.mxu0 0.0
    %683 = vmatpush1.xpose.msra.mxu0 0.0
    %684 = vmatprep.subr.mxu0 0.0
    %685 = vmatpush1.xpose.msra.mxu0 0.0
    %686 = vmatprep.mubr.f32.mxu0 0.0
    %687 = vmatmul.mubr.f32.gmra.mrb[0].mxu0 %v618
    %v688 = vpop.f32.mrb[0].mxu0
    %v689 = vadd.f32 0.0, %v688
    %v690 = vpop.f32.mrb[0].mxu0
    %691 = vdwg.mxu0
    %692 = vrot.lane.b32.xlu0 %v144, 104
    %v693 = vpop.permute.xlu0 %692
    %694 = vrot.lane.b32.xlu0 %v144, 72
    %v695 = vpop.permute.xlu0 %694
    %v696 = vsel %vm150, %v693, 0
    %v698 = vsel %vm150, %v695, 0
    %700 = vmatprep.subr.mxu0 0.0
    %701 = vmatpush1.xpose.msra.mxu0 %v698
    %702 = vmatprep.subr.mxu0 0.0
    %703 = vmatpush1.xpose.msra.mxu0 0.0
    %704 = vmatprep.subr.mxu0 0.0
    %705 = vmatpush1.xpose.msra.mxu0 0.0
    %706 = vmatprep.subr.mxu0 0.0
    %707 = vmatpush1.xpose.msra.mxu0 0.0
    %708 = vmatprep.subr.mxu0 0.0
    %709 = vmatpush1.xpose.msra.mxu0 0.0
    %710 = vmatprep.subr.mxu0 0.0
    %711 = vmatpush1.xpose.msra.mxu0 0.0
    %712 = vmatprep.subr.mxu0 0.0
    %713 = vmatpush1.xpose.msra.mxu0 0.0
    %714 = vmatprep.subr.mxu0 0.0
    %715 = vmatpush1.xpose.msra.mxu0 0.0
    %716 = vmatprep.subr.mxu0 0.0
    %717 = vmatpush1.xpose.msra.mxu0 0.0
    %718 = vmatprep.subr.mxu0 0.0
    %719 = vmatpush1.xpose.msra.mxu0 0.0
    %720 = vmatprep.subr.mxu0 0.0
    %721 = vmatpush1.xpose.msra.mxu0 0.0
    %722 = vmatprep.subr.mxu0 0.0
    %723 = vmatpush1.xpose.msra.mxu0 0.0
    %724 = vmatprep.subr.mxu0 0.0
    %725 = vmatpush1.xpose.msra.mxu0 0.0
    %726 = vmatprep.subr.mxu0 0.0
    %727 = vmatpush1.xpose.msra.mxu0 0.0
    %728 = vmatprep.subr.mxu0 0.0
    %729 = vmatpush1.xpose.msra.mxu0 0.0
    %730 = vmatprep.subr.mxu0 0.0
    %731 = vmatpush1.xpose.msra.mxu0 0.0
    %732 = vmatprep.subr.mxu0 0.0
    %733 = vmatpush1.xpose.msra.mxu0 0.0
    %734 = vmatprep.subr.mxu0 0.0
    %735 = vmatpush1.xpose.msra.mxu0 0.0
    %736 = vmatprep.subr.mxu0 0.0
    %737 = vmatpush1.xpose.msra.mxu0 0.0
    %738 = vmatprep.subr.mxu0 0.0
    %739 = vmatpush1.xpose.msra.mxu0 0.0
    %740 = vmatprep.subr.mxu0 0.0
    %741 = vmatpush1.xpose.msra.mxu0 0.0
    %742 = vmatprep.subr.mxu0 0.0
    %743 = vmatpush1.xpose.msra.mxu0 0.0
    %744 = vmatprep.subr.mxu0 0.0
    %745 = vmatpush1.xpose.msra.mxu0 0.0
    %746 = vmatprep.subr.mxu0 0.0
    %747 = vmatpush1.xpose.msra.mxu0 0.0
    %748 = vmatprep.subr.mxu0 0.0
    %749 = vmatpush1.xpose.msra.mxu0 0.0
    %750 = vmatprep.subr.mxu0 0.0
    %751 = vmatpush1.xpose.msra.mxu0 0.0
    %752 = vmatprep.subr.mxu0 0.0
    %753 = vmatpush1.xpose.msra.mxu0 0.0
    %754 = vmatprep.subr.mxu0 0.0
    %755 = vmatpush1.xpose.msra.mxu0 0.0
    %756 = vmatprep.subr.mxu0 0.0
    %757 = vmatpush1.xpose.msra.mxu0 0.0
    %758 = vmatprep.subr.mxu0 0.0
    %759 = vmatpush1.xpose.msra.mxu0 0.0
    %760 = vmatprep.subr.mxu0 0.0
    %761 = vmatpush1.xpose.msra.mxu0 0.0
    %762 = vmatprep.subr.mxu0 0.0
    %763 = vmatpush1.xpose.msra.mxu0 0.0
    %764 = vmatprep.mubr.f32.mxu0 0.0
    %765 = vmatmul.mubr.f32.gmra.mrb[0].mxu0 %v696
    %v766 = vpop.f32.mrb[0].mxu0
    %v767 = vadd.f32 0.0, %v766
    %v768 = vpop.f32.mrb[0].mxu0
    %769 = vdwg.mxu0
    %v770 = vmul.f32 %v222, 0.35355338
    %v771 = vmul.f32 %v300, 0.35355338
    %v772 = vmul.f32 %v378, 0.35355338
    %v773 = vmul.f32 %v456, 0.35355338
    %v774 = vmul.f32 %v533, 0.35355338
    %v775 = vmul.f32 %v611, 0.35355338
    %v776 = vmul.f32 %v689, 0.35355338
    %v777 = vmul.f32 %v767, 0.35355338
    %v778 = vadd.f32 %v770, %v77
    %v779 = vadd.f32 %v771, %v77
    %v780 = vadd.f32 %v772, %v77
    %v781 = vadd.f32 %v773, %v77
    %v782 = vadd.f32 %v774, %v77
    %v783 = vadd.f32 %v775, %v77
    %v784 = vadd.f32 %v776, %v77
    %v785 = vadd.f32 %v777, %v77
    %v786 = vsel %vm150, %v778, -inf
    %787 = vmax.xlane.f32.xlu0 %v786
    %v788 = vpop.xlane.xlu0 %787
    %v789 = vsel %vm150, %v779, -inf
    %790 = vmax.xlane.f32.xlu0 %v789
    %v791 = vpop.xlane.xlu0 %790
    %v792 = vsel %vm150, %v780, -inf
    %793 = vmax.xlane.f32.xlu0 %v792
    %v794 = vpop.xlane.xlu0 %793
    %v795 = vsel %vm150, %v781, -inf
    %796 = vmax.xlane.f32.xlu0 %v795
    %v797 = vpop.xlane.xlu0 %796
    %v798 = vsel %vm150, %v782, -inf
    %799 = vmax.xlane.f32.xlu0 %v798
    %v800 = vpop.xlane.xlu0 %799
    %v801 = vsel %vm150, %v783, -inf
    %802 = vmax.xlane.f32.xlu0 %v801
    %v803 = vpop.xlane.xlu0 %802
    %v804 = vsel %vm150, %v784, -inf
    %805 = vmax.xlane.f32.xlu0 %v804
    %v806 = vpop.xlane.xlu0 %805
    %v807 = vsel %vm150, %v785, -inf
    %808 = vmax.xlane.f32.xlu0 %v807
    %v809 = vpop.xlane.xlu0 %808
    %v810 = vsub.f32 %v778, %v788
    %v811 = vsub.f32 %v779, %v791
    %v812 = vsub.f32 %v780, %v794
    %v813 = vsub.f32 %v781, %v797
    %v814 = vsub.f32 %v782, %v800
    %v815 = vsub.f32 %v783, %v803
    %v816 = vsub.f32 %v784, %v806
    %v817 = vsub.f32 %v785, %v809
    %v818 = vmul.f32 %v810, 1.442695
    %v819 = vpow.pop %v818
    %v820 = vmul.f32 %v811, 1.442695
    %v821 = vpow.pop %v820
    %v822 = vmul.f32 %v812, 1.442695
    %v823 = vpow.pop %v822
    %v824 = vmul.f32 %v813, 1.442695
    %v825 = vpow.pop %v824
    %v826 = vmul.f32 %v814, 1.442695
    %v827 = vpow.pop %v826
    %v828 = vmul.f32 %v815, 1.442695
    %v829 = vpow.pop %v828
    %v830 = vmul.f32 %v816, 1.442695
    %v831 = vpow.pop %v830
    %v832 = vmul.f32 %v817, 1.442695
    %v833 = vpow.pop %v832
    %v834 = vsel %vm150, %v819, 0.0
    %835 = vadd.xlane.f32.xlu0 %v834
    %v836 = vpop.xlane.xlu0 %835
    %v837 = vsel %vm150, %v821, 0.0
    %838 = vadd.xlane.f32.xlu0 %v837
    %v839 = vpop.xlane.xlu0 %838
    %v840 = vsel %vm150, %v823, 0.0
    %841 = vadd.xlane.f32.xlu0 %v840
    %v842 = vpop.xlane.xlu0 %841
    %v843 = vsel %vm150, %v825, 0.0
    %844 = vadd.xlane.f32.xlu0 %v843
    %v845 = vpop.xlane.xlu0 %844
    %v846 = vsel %vm150, %v827, 0.0
    %847 = vadd.xlane.f32.xlu0 %v846
    %v848 = vpop.xlane.xlu0 %847
    %v849 = vsel %vm150, %v829, 0.0
    %850 = vadd.xlane.f32.xlu0 %v849
    %v851 = vpop.xlane.xlu0 %850
    %v852 = vsel %vm150, %v831, 0.0
    %853 = vadd.xlane.f32.xlu0 %v852
    %v854 = vpop.xlane.xlu0 %853
    %v855 = vsel %vm150, %v833, 0.0
    %856 = vadd.xlane.f32.xlu0 %v855
    %v857 = vpop.xlane.xlu0 %856
    %v858 = vrcp.pop %v836
    %v859 = vrcp.pop %v839
    %v860 = vrcp.pop %v842
    %v861 = vrcp.pop %v845
    %v862 = vrcp.pop %v848
    %v863 = vrcp.pop %v851
    %v864 = vrcp.pop %v854
    %v865 = vrcp.pop %v857
    %v866 = vmul.f32 %v819, %v858
    %v867 = vmul.f32 %v821, %v859
    %v868 = vmul.f32 %v823, %v860
    %v869 = vmul.f32 %v825, %v861
    %v870 = vmul.f32 %v827, %v862
    %v871 = vmul.f32 %v829, %v863
    %v872 = vmul.f32 %v831, %v864
    %v873 = vmul.f32 %v833, %v865
    %874 = vrot.lane.b32.xlu0 %v141, 64
    %v875 = vpop.permute.xlu0 %874
    %v878 = vsel %vm150, %v866, 0
    %880 = vmatprep.subr.mxu0 0.0
    %881 = vmatpush1.msra.mxu0 %v875
    %882 = vmatprep.subr.mxu0 0.0
    %883 = vmatpush1.msra.mxu0 0.0
    %884 = vmatprep.subr.mxu0 0.0
    %885 = vmatpush1.msra.mxu0 0.0
    %886 = vmatprep.subr.mxu0 0.0
    %887 = vmatpush1.msra.mxu0 0.0
    %888 = vmatprep.subr.mxu0 0.0
    %889 = vmatpush1.msra.mxu0 0.0
    %890 = vmatprep.subr.mxu0 0.0
    %891 = vmatpush1.msra.mxu0 0.0
    %892 = vmatprep.subr.mxu0 0.0
    %893 = vmatpush1.msra.mxu0 0.0
    %894 = vmatprep.subr.mxu0 0.0
    %895 = vmatpush1.msra.mxu0 0.0
    %896 = vmatprep.subr.mxu0 0.0
    %897 = vmatpush1.msra.mxu0 0.0
    %898 = vmatprep.subr.mxu0 0.0
    %899 = vmatpush1.msra.mxu0 0.0
    %900 = vmatprep.subr.mxu0 0.0
    %901 = vmatpush1.msra.mxu0 0.0
    %902 = vmatprep.subr.mxu0 0.0
    %903 = vmatpush1.msra.mxu0 0.0
    %904 = vmatprep.subr.mxu0 0.0
    %905 = vmatpush1.msra.mxu0 0.0
    %906 = vmatprep.subr.mxu0 0.0
    %907 = vmatpush1.msra.mxu0 0.0
    %908 = vmatprep.subr.mxu0 0.0
    %909 = vmatpush1.msra.mxu0 0.0
    %910 = vmatprep.subr.mxu0 0.0
    %911 = vmatpush1.msra.mxu0 0.0
    %912 = vmatprep.subr.mxu0 0.0
    %913 = vmatpush1.msra.mxu0 0.0
    %914 = vmatprep.subr.mxu0 0.0
    %915 = vmatpush1.msra.mxu0 0.0
    %916 = vmatprep.subr.mxu0 0.0
    %917 = vmatpush1.msra.mxu0 0.0
    %918 = vmatprep.subr.mxu0 0.0
    %919 = vmatpush1.msra.mxu0 0.0
    %920 = vmatprep.subr.mxu0 0.0
    %921 = vmatpush1.msra.mxu0 0.0
    %922 = vmatprep.subr.mxu0 0.0
    %923 = vmatpush1.msra.mxu0 0.0
    %924 = vmatprep.subr.mxu0 0.0
    %925 = vmatpush1.msra.mxu0 0.0
    %926 = vmatprep.subr.mxu0 0.0
    %927 = vmatpush1.msra.mxu0 0.0
    %928 = vmatprep.subr.mxu0 0.0
    %929 = vmatpush1.msra.mxu0 0.0
    %930 = vmatprep.subr.mxu0 0.0
    %931 = vmatpush1.msra.mxu0 0.0
    %932 = vmatprep.subr.mxu0 0.0
    %933 = vmatpush1.msra.mxu0 0.0
    %934 = vmatprep.subr.mxu0 0.0
    %935 = vmatpush1.msra.mxu0 0.0
    %936 = vmatprep.subr.mxu0 0.0
    %937 = vmatpush1.msra.mxu0 0.0
    %938 = vmatprep.subr.mxu0 0.0
    %939 = vmatpush1.msra.mxu0 0.0
    %940 = vmatprep.subr.mxu0 0.0
    %941 = vmatpush1.msra.mxu0 0.0
    %942 = vmatprep.subr.mxu0 0.0
    %943 = vmatpush1.msra.mxu0 0.0
    %944 = vmatprep.mubr.f32.mxu0 0.0
    %945 = vmatmul.mubr.f32.gmra.mrb[0].mxu0 %v878
    %v946 = vpop.f32.mrb[0].mxu0
    %v947 = vadd.f32 0.0, %v946
    %v948 = vpop.f32.mrb[0].mxu0
    %949 = vdwg.mxu0
    %950 = vst.msk [vmem:[#allocation2] sm:$0xff] %vm150, %v947
    %951 = vrot.lane.b32.xlu0 %v141, 56
    %v952 = vpop.permute.xlu0 %951
    %v955 = vsel %vm150, %v867, 0
    %957 = vmatprep.subr.mxu0 0.0
    %958 = vmatpush1.msra.mxu0 %v952
    %959 = vmatprep.subr.mxu0 0.0
    %960 = vmatpush1.msra.mxu0 0.0
    %961 = vmatprep.subr.mxu0 0.0
    %962 = vmatpush1.msra.mxu0 0.0
    %963 = vmatprep.subr.mxu0 0.0
    %964 = vmatpush1.msra.mxu0 0.0
    %965 = vmatprep.subr.mxu0 0.0
    %966 = vmatpush1.msra.mxu0 0.0
    %967 = vmatprep.subr.mxu0 0.0
    %968 = vmatpush1.msra.mxu0 0.0
    %969 = vmatprep.subr.mxu0 0.0
    %970 = vmatpush1.msra.mxu0 0.0
    %971 = vmatprep.subr.mxu0 0.0
    %972 = vmatpush1.msra.mxu0 0.0
    %973 = vmatprep.subr.mxu0 0.0
    %974 = vmatpush1.msra.mxu0 0.0
    %975 = vmatprep.subr.mxu0 0.0
    %976 = vmatpush1.msra.mxu0 0.0
    %977 = vmatprep.subr.mxu0 0.0
    %978 = vmatpush1.msra.mxu0 0.0
    %979 = vmatprep.subr.mxu0 0.0
    %980 = vmatpush1.msra.mxu0 0.0
    %981 = vmatprep.subr.mxu0 0.0
    %982 = vmatpush1.msra.mxu0 0.0
    %983 = vmatprep.subr.mxu0 0.0
    %984 = vmatpush1.msra.mxu0 0.0
    %985 = vmatprep.subr.mxu0 0.0
    %986 = vmatpush1.msra.mxu0 0.0
    %987 = vmatprep.subr.mxu0 0.0
    %988 = vmatpush1.msra.mxu0 0.0
    %989 = vmatprep.subr.mxu0 0.0
    %990 = vmatpush1.msra.mxu0 0.0
    %991 = vmatprep.subr.mxu0 0.0
    %992 = vmatpush1.msra.mxu0 0.0
    %993 = vmatprep.subr.mxu0 0.0
    %994 = vmatpush1.msra.mxu0 0.0
    %995 = vmatprep.subr.mxu0 0.0
    %996 = vmatpush1.msra.mxu0 0.0
    %997 = vmatprep.subr.mxu0 0.0
    %998 = vmatpush1.msra.mxu0 0.0
    %999 = vmatprep.subr.mxu0 0.0
    %1000 = vmatpush1.msra.mxu0 0.0
    %1001 = vmatprep.subr.mxu0 0.0
    %1002 = vmatpush1.msra.mxu0 0.0
    %1003 = vmatprep.subr.mxu0 0.0
    %1004 = vmatpush1.msra.mxu0 0.0
    %1005 = vmatprep.subr.mxu0 0.0
    %1006 = vmatpush1.msra.mxu0 0.0
    %1007 = vmatprep.subr.mxu0 0.0
    %1008 = vmatpush1.msra.mxu0 0.0
    %1009 = vmatprep.subr.mxu0 0.0
    %1010 = vmatpush1.msra.mxu0 0.0
    %1011 = vmatprep.subr.mxu0 0.0
    %1012 = vmatpush1.msra.mxu0 0.0
    %1013 = vmatprep.subr.mxu0 0.0
    %1014 = vmatpush1.msra.mxu0 0.0
    %1015 = vmatprep.subr.mxu0 0.0
    %1016 = vmatpush1.msra.mxu0 0.0
    %1017 = vmatprep.subr.mxu0 0.0
    %1018 = vmatpush1.msra.mxu0 0.0
    %1019 = vmatprep.subr.mxu0 0.0
    %1020 = vmatpush1.msra.mxu0 0.0
    %1021 = vmatprep.mubr.f32.mxu0 0.0
    %1022 = vmatmul.mubr.f32.gmra.mrb[0].mxu0 %v955
    %v1023 = vpop.f32.mrb[0].mxu0
    %v1024 = vadd.f32 0.0, %v1023
    %v1025 = vpop.f32.mrb[0].mxu0
    %1026 = vdwg.mxu0
    %1028 = vrot.lane.b32.xlu0 %v1024, 8
    %v1029 = vpop.permute.xlu0 %1028
    %vm1031 = vcmask 130112
    %1032 = vst.msk [vmem:[#allocation2] sm:$0xff] %vm1031, %v1029
    %1033 = vrot.lane.b32.xlu0 %v141, 48
    %v1034 = vpop.permute.xlu0 %1033
    %v1037 = vsel %vm150, %v868, 0
    %1039 = vmatprep.subr.mxu0 0.0
    %1040 = vmatpush1.msra.mxu0 %v1034
    %1041 = vmatprep.subr.mxu0 0.0
    %1042 = vmatpush1.msra.mxu0 0.0
    %1043 = vmatprep.subr.mxu0 0.0
    %1044 = vmatpush1.msra.mxu0 0.0
    %1045 = vmatprep.subr.mxu0 0.0
    %1046 = vmatpush1.msra.mxu0 0.0
    %1047 = vmatprep.subr.mxu0 0.0
    %1048 = vmatpush1.msra.mxu0 0.0
    %1049 = vmatprep.subr.mxu0 0.0
    %1050 = vmatpush1.msra.mxu0 0.0
    %1051 = vmatprep.subr.mxu0 0.0
    %1052 = vmatpush1.msra.mxu0 0.0
    %1053 = vmatprep.subr.mxu0 0.0
    %1054 = vmatpush1.msra.mxu0 0.0
    %1055 = vmatprep.subr.mxu0 0.0
    %1056 = vmatpush1.msra.mxu0 0.0
    %1057 = vmatprep.subr.mxu0 0.0
    %1058 = vmatpush1.msra.mxu0 0.0
    %1059 = vmatprep.subr.mxu0 0.0
    %1060 = vmatpush1.msra.mxu0 0.0
    %1061 = vmatprep.subr.mxu0 0.0
    %1062 = vmatpush1.msra.mxu0 0.0
    %1063 = vmatprep.subr.mxu0 0.0
    %1064 = vmatpush1.msra.mxu0 0.0
    %1065 = vmatprep.subr.mxu0 0.0
    %1066 = vmatpush1.msra.mxu0 0.0
    %1067 = vmatprep.subr.mxu0 0.0
    %1068 = vmatpush1.msra.mxu0 0.0
    %1069 = vmatprep.subr.mxu0 0.0
    %1070 = vmatpush1.msra.mxu0 0.0
    %1071 = vmatprep.subr.mxu0 0.0
    %1072 = vmatpush1.msra.mxu0 0.0
    %1073 = vmatprep.subr.mxu0 0.0
    %1074 = vmatpush1.msra.mxu0 0.0
    %1075 = vmatprep.subr.mxu0 0.0
    %1076 = vmatpush1.msra.mxu0 0.0
    %1077 = vmatprep.subr.mxu0 0.0
    %1078 = vmatpush1.msra.mxu0 0.0
    %1079 = vmatprep.subr.mxu0 0.0
    %1080 = vmatpush1.msra.mxu0 0.0
    %1081 = vmatprep.subr.mxu0 0.0
    %1082 = vmatpush1.msra.mxu0 0.0
    %1083 = vmatprep.subr.mxu0 0.0
    %1084 = vmatpush1.msra.mxu0 0.0
    %1085 = vmatprep.subr.mxu0 0.0
    %1086 = vmatpush1.msra.mxu0 0.0
    %1087 = vmatprep.subr.mxu0 0.0
    %1088 = vmatpush1.msra.mxu0 0.0
    %1089 = vmatprep.subr.mxu0 0.0
    %1090 = vmatpush1.msra.mxu0 0.0
    %1091 = vmatprep.subr.mxu0 0.0
    %1092 = vmatpush1.msra.mxu0 0.0
    %1093 = vmatprep.subr.mxu0 0.0
    %1094 = vmatpush1.msra.mxu0 0.0
    %1095 = vmatprep.subr.mxu0 0.0
    %1096 = vmatpush1.msra.mxu0 0.0
    %1097 = vmatprep.subr.mxu0 0.0
    %1098 = vmatpush1.msra.mxu0 0.0
    %1099 = vmatprep.subr.mxu0 0.0
    %1100 = vmatpush1.msra.mxu0 0.0
    %1101 = vmatprep.subr.mxu0 0.0
    %1102 = vmatpush1.msra.mxu0 0.0
    %1103 = vmatprep.mubr.f32.mxu0 0.0
    %1104 = vmatmul.mubr.f32.gmra.mrb[0].mxu0 %v1037
    %v1105 = vpop.f32.mrb[0].mxu0
    %v1106 = vadd.f32 0.0, %v1105
    %v1107 = vpop.f32.mrb[0].mxu0
    %1108 = vdwg.mxu0
    %1110 = vrot.lane.b32.xlu0 %v1106, 16
    %v1111 = vpop.permute.xlu0 %1110
    %vm1113 = vcmask 195712
    %1114 = vst.msk [vmem:[#allocation2] sm:$0xff] %vm1113, %v1111
    %1115 = vrot.lane.b32.xlu0 %v141, 40
    %v1116 = vpop.permute.xlu0 %1115
    %v1119 = vsel %vm150, %v869, 0
    %1121 = vmatprep.subr.mxu0 0.0
    %1122 = vmatpush1.msra.mxu0 %v1116
    %1123 = vmatprep.subr.mxu0 0.0
    %1124 = vmatpush1.msra.mxu0 0.0
    %1125 = vmatprep.subr.mxu0 0.0
    %1126 = vmatpush1.msra.mxu0 0.0
    %1127 = vmatprep.subr.mxu0 0.0
    %1128 = vmatpush1.msra.mxu0 0.0
    %1129 = vmatprep.subr.mxu0 0.0
    %1130 = vmatpush1.msra.mxu0 0.0
    %1131 = vmatprep.subr.mxu0 0.0
    %1132 = vmatpush1.msra.mxu0 0.0
    %1133 = vmatprep.subr.mxu0 0.0
    %1134 = vmatpush1.msra.mxu0 0.0
    %1135 = vmatprep.subr.mxu0 0.0
    %1136 = vmatpush1.msra.mxu0 0.0
    %1137 = vmatprep.subr.mxu0 0.0
    %1138 = vmatpush1.msra.mxu0 0.0
    %1139 = vmatprep.subr.mxu0 0.0
    %1140 = vmatpush1.msra.mxu0 0.0
    %1141 = vmatprep.subr.mxu0 0.0
    %1142 = vmatpush1.msra.mxu0 0.0
    %1143 = vmatprep.subr.mxu0 0.0
    %1144 = vmatpush1.msra.mxu0 0.0
    %1145 = vmatprep.subr.mxu0 0.0
    %1146 = vmatpush1.msra.mxu0 0.0
    %1147 = vmatprep.subr.mxu0 0.0
    %1148 = vmatpush1.msra.mxu0 0.0
    %1149 = vmatprep.subr.mxu0 0.0
    %1150 = vmatpush1.msra.mxu0 0.0
    %1151 = vmatprep.subr.mxu0 0.0
    %1152 = vmatpush1.msra.mxu0 0.0
    %1153 = vmatprep.subr.mxu0 0.0
    %1154 = vmatpush1.msra.mxu0 0.0
    %1155 = vmatprep.subr.mxu0 0.0
    %1156 = vmatpush1.msra.mxu0 0.0
    %1157 = vmatprep.subr.mxu0 0.0
    %1158 = vmatpush1.msra.mxu0 0.0
    %1159 = vmatprep.subr.mxu0 0.0
    %1160 = vmatpush1.msra.mxu0 0.0
    %1161 = vmatprep.subr.mxu0 0.0
    %1162 = vmatpush1.msra.mxu0 0.0
    %1163 = vmatprep.subr.mxu0 0.0
    %1164 = vmatpush1.msra.mxu0 0.0
    %1165 = vmatprep.subr.mxu0 0.0
    %1166 = vmatpush1.msra.mxu0 0.0
    %1167 = vmatprep.subr.mxu0 0.0
    %1168 = vmatpush1.msra.mxu0 0.0
    %1169 = vmatprep.subr.mxu0 0.0
    %1170 = vmatpush1.msra.mxu0 0.0
    %1171 = vmatprep.subr.mxu0 0.0
    %1172 = vmatpush1.msra.mxu0 0.0
    %1173 = vmatprep.subr.mxu0 0.0
    %1174 = vmatpush1.msra.mxu0 0.0
    %1175 = vmatprep.subr.mxu0 0.0
    %1176 = vmatpush1.msra.mxu0 0.0
    %1177 = vmatprep.subr.mxu0 0.0
    %1178 = vmatpush1.msra.mxu0 0.0
    %1179 = vmatprep.subr.mxu0 0.0
    %1180 = vmatpush1.msra.mxu0 0.0
    %1181 = vmatprep.subr.mxu0 0.0
    %1182 = vmatpush1.msra.mxu0 0.0
    %1183 = vmatprep.subr.mxu0 0.0
    %1184 = vmatpush1.msra.mxu0 0.0
    %1185 = vmatprep.mubr.f32.mxu0 0.0
    %1186 = vmatmul.mubr.f32.gmra.mrb[0].mxu0 %v1119
    %v1187 = vpop.f32.mrb[0].mxu0
    %v1188 = vadd.f32 0.0, %v1187
    %v1189 = vpop.f32.mrb[0].mxu0
    %1190 = vdwg.mxu0
    %1192 = vrot.lane.b32.xlu0 %v1188, 24
    %v1193 = vpop.permute.xlu0 %1192
    %vm1195 = vcmask 261312
    %1196 = vst.msk [vmem:[#allocation2] sm:$0xff] %vm1195, %v1193
    %1197 = vrot.lane.b32.xlu0 %v144, 64
    %v1198 = vpop.permute.xlu0 %1197
    %v1201 = vsel %vm150, %v870, 0
    %1203 = vmatprep.subr.mxu0 0.0
    %1204 = vmatpush1.msra.mxu0 %v1198
    %1205 = vmatprep.subr.mxu0 0.0
    %1206 = vmatpush1.msra.mxu0 0.0
    %1207 = vmatprep.subr.mxu0 0.0
    %1208 = vmatpush1.msra.mxu0 0.0
    %1209 = vmatprep.subr.mxu0 0.0
    %1210 = vmatpush1.msra.mxu0 0.0
    %1211 = vmatprep.subr.mxu0 0.0
    %1212 = vmatpush1.msra.mxu0 0.0
    %1213 = vmatprep.subr.mxu0 0.0
    %1214 = vmatpush1.msra.mxu0 0.0
    %1215 = vmatprep.subr.mxu0 0.0
    %1216 = vmatpush1.msra.mxu0 0.0
    %1217 = vmatprep.subr.mxu0 0.0
    %1218 = vmatpush1.msra.mxu0 0.0
    %1219 = vmatprep.subr.mxu0 0.0
    %1220 = vmatpush1.msra.mxu0 0.0
    %1221 = vmatprep.subr.mxu0 0.0
    %1222 = vmatpush1.msra.mxu0 0.0
    %1223 = vmatprep.subr.mxu0 0.0
    %1224 = vmatpush1.msra.mxu0 0.0
    %1225 = vmatprep.subr.mxu0 0.0
    %1226 = vmatpush1.msra.mxu0 0.0
    %1227 = vmatprep.subr.mxu0 0.0
    %1228 = vmatpush1.msra.mxu0 0.0
    %1229 = vmatprep.subr.mxu0 0.0
    %1230 = vmatpush1.msra.mxu0 0.0
    %1231 = vmatprep.subr.mxu0 0.0
    %1232 = vmatpush1.msra.mxu0 0.0
    %1233 = vmatprep.subr.mxu0 0.0
    %1234 = vmatpush1.msra.mxu0 0.0
    %1235 = vmatprep.subr.mxu0 0.0
    %1236 = vmatpush1.msra.mxu0 0.0
    %1237 = vmatprep.subr.mxu0 0.0
    %1238 = vmatpush1.msra.mxu0 0.0
    %1239 = vmatprep.subr.mxu0 0.0
    %1240 = vmatpush1.msra.mxu0 0.0
    %1241 = vmatprep.subr.mxu0 0.0
    %1242 = vmatpush1.msra.mxu0 0.0
    %1243 = vmatprep.subr.mxu0 0.0
    %1244 = vmatpush1.msra.mxu0 0.0
    %1245 = vmatprep.subr.mxu0 0.0
    %1246 = vmatpush1.msra.mxu0 0.0
    %1247 = vmatprep.subr.mxu0 0.0
    %1248 = vmatpush1.msra.mxu0 0.0
    %1249 = vmatprep.subr.mxu0 0.0
    %1250 = vmatpush1.msra.mxu0 0.0
    %1251 = vmatprep.subr.mxu0 0.0
    %1252 = vmatpush1.msra.mxu0 0.0
    %1253 = vmatprep.subr.mxu0 0.0
    %1254 = vmatpush1.msra.mxu0 0.0
    %1255 = vmatprep.subr.mxu0 0.0
    %1256 = vmatpush1.msra.mxu0 0.0
    %1257 = vmatprep.subr.mxu0 0.0
    %1258 = vmatpush1.msra.mxu0 0.0
    %1259 = vmatprep.subr.mxu0 0.0
    %1260 = vmatpush1.msra.mxu0 0.0
    %1261 = vmatprep.subr.mxu0 0.0
    %1262 = vmatpush1.msra.mxu0 0.0
    %1263 = vmatprep.subr.mxu0 0.0
    %1264 = vmatpush1.msra.mxu0 0.0
    %1265 = vmatprep.subr.mxu0 0.0
    %1266 = vmatpush1.msra.mxu0 0.0
    %1267 = vmatprep.mubr.f32.mxu0 0.0
    %1268 = vmatmul.mubr.f32.gmra.mrb[0].mxu0 %v1201
    %v1269 = vpop.f32.mrb[0].mxu0
    %v1270 = vadd.f32 0.0, %v1269
    %v1271 = vpop.f32.mrb[0].mxu0
    %1272 = vdwg.mxu0
    %1273 = vst.msk [vmem:[#allocation2 + $0x8] sm:$0xff] %vm150, %v1270
    %1274 = vrot.lane.b32.xlu0 %v144, 56
    %v1275 = vpop.permute.xlu0 %1274
    %v1278 = vsel %vm150, %v871, 0
    %1280 = vmatprep.subr.mxu0 0.0
    %1281 = vmatpush1.msra.mxu0 %v1275
    %1282 = vmatprep.subr.mxu0 0.0
    %1283 = vmatpush1.msra.mxu0 0.0
    %1284 = vmatprep.subr.mxu0 0.0
    %1285 = vmatpush1.msra.mxu0 0.0
    %1286 = vmatprep.subr.mxu0 0.0
    %1287 = vmatpush1.msra.mxu0 0.0
    %1288 = vmatprep.subr.mxu0 0.0
    %1289 = vmatpush1.msra.mxu0 0.0
    %1290 = vmatprep.subr.mxu0 0.0
    %1291 = vmatpush1.msra.mxu0 0.0
    %1292 = vmatprep.subr.mxu0 0.0
    %1293 = vmatpush1.msra.mxu0 0.0
    %1294 = vmatprep.subr.mxu0 0.0
    %1295 = vmatpush1.msra.mxu0 0.0
    %1296 = vmatprep.subr.mxu0 0.0
    %1297 = vmatpush1.msra.mxu0 0.0
    %1298 = vmatprep.subr.mxu0 0.0
    %1299 = vmatpush1.msra.mxu0 0.0
    %1300 = vmatprep.subr.mxu0 0.0
    %1301 = vmatpush1.msra.mxu0 0.0
    %1302 = vmatprep.subr.mxu0 0.0
    %1303 = vmatpush1.msra.mxu0 0.0
    %1304 = vmatprep.subr.mxu0 0.0
    %1305 = vmatpush1.msra.mxu0 0.0
    %1306 = vmatprep.subr.mxu0 0.0
    %1307 = vmatpush1.msra.mxu0 0.0
    %1308 = vmatprep.subr.mxu0 0.0
    %1309 = vmatpush1.msra.mxu0 0.0
    %1310 = vmatprep.subr.mxu0 0.0
    %1311 = vmatpush1.msra.mxu0 0.0
    %1312 = vmatprep.subr.mxu0 0.0
    %1313 = vmatpush1.msra.mxu0 0.0
    %1314 = vmatprep.subr.mxu0 0.0
    %1315 = vmatpush1.msra.mxu0 0.0
    %1316 = vmatprep.subr.mxu0 0.0
    %1317 = vmatpush1.msra.mxu0 0.0
    %1318 = vmatprep.subr.mxu0 0.0
    %1319 = vmatpush1.msra.mxu0 0.0
    %1320 = vmatprep.subr.mxu0 0.0
    %1321 = vmatpush1.msra.mxu0 0.0
    %1322 = vmatprep.subr.mxu0 0.0
    %1323 = vmatpush1.msra.mxu0 0.0
    %1324 = vmatprep.subr.mxu0 0.0
    %1325 = vmatpush1.msra.mxu0 0.0
    %1326 = vmatprep.subr.mxu0 0.0
    %1327 = vmatpush1.msra.mxu0 0.0
    %1328 = vmatprep.subr.mxu0 0.0
    %1329 = vmatpush1.msra.mxu0 0.0
    %1330 = vmatprep.subr.mxu0 0.0
    %1331 = vmatpush1.msra.mxu0 0.0
    %1332 = vmatprep.subr.mxu0 0.0
    %1333 = vmatpush1.msra.mxu0 0.0
    %1334 = vmatprep.subr.mxu0 0.0
    %1335 = vmatpush1.msra.mxu0 0.0
    %1336 = vmatprep.subr.mxu0 0.0
    %1337 = vmatpush1.msra.mxu0 0.0
    %1338 = vmatprep.subr.mxu0 0.0
    %1339 = vmatpush1.msra.mxu0 0.0
    %1340 = vmatprep.subr.mxu0 0.0
    %1341 = vmatpush1.msra.mxu0 0.0
    %1342 = vmatprep.subr.mxu0 0.0
    %1343 = vmatpush1.msra.mxu0 0.0
    %1344 = vmatprep.mubr.f32.mxu0 0.0
    %1345 = vmatmul.mubr.f32.gmra.mrb[0].mxu0 %v1278
    %v1346 = vpop.f32.mrb[0].mxu0
    %v1347 = vadd.f32 0.0, %v1346
    %v1348 = vpop.f32.mrb[0].mxu0
    %1349 = vdwg.mxu0
    %1351 = vrot.lane.b32.xlu0 %v1347, 8
    %v1352 = vpop.permute.xlu0 %1351
    %1354 = vst.msk [vmem:[#allocation2 + $0x8] sm:$0xff] %vm1031, %v1352
    %1355 = vrot.lane.b32.xlu0 %v144, 48
    %v1356 = vpop.permute.xlu0 %1355
    %v1359 = vsel %vm150, %v872, 0
    %1361 = vmatprep.subr.mxu0 0.0
    %1362 = vmatpush1.msra.mxu0 %v1356
    %1363 = vmatprep.subr.mxu0 0.0
    %1364 = vmatpush1.msra.mxu0 0.0
    %1365 = vmatprep.subr.mxu0 0.0
    %1366 = vmatpush1.msra.mxu0 0.0
    %1367 = vmatprep.subr.mxu0 0.0
    %1368 = vmatpush1.msra.mxu0 0.0
    %1369 = vmatprep.subr.mxu0 0.0
    %1370 = vmatpush1.msra.mxu0 0.0
    %1371 = vmatprep.subr.mxu0 0.0
    %1372 = vmatpush1.msra.mxu0 0.0
    %1373 = vmatprep.subr.mxu0 0.0
    %1374 = vmatpush1.msra.mxu0 0.0
    %1375 = vmatprep.subr.mxu0 0.0
    %1376 = vmatpush1.msra.mxu0 0.0
    %1377 = vmatprep.subr.mxu0 0.0
    %1378 = vmatpush1.msra.mxu0 0.0
    %1379 = vmatprep.subr.mxu0 0.0
    %1380 = vmatpush1.msra.mxu0 0.0
    %1381 = vmatprep.subr.mxu0 0.0
    %1382 = vmatpush1.msra.mxu0 0.0
    %1383 = vmatprep.subr.mxu0 0.0
    %1384 = vmatpush1.msra.mxu0 0.0
    %1385 = vmatprep.subr.mxu0 0.0
    %1386 = vmatpush1.msra.mxu0 0.0
    %1387 = vmatprep.subr.mxu0 0.0
    %1388 = vmatpush1.msra.mxu0 0.0
    %1389 = vmatprep.subr.mxu0 0.0
    %1390 = vmatpush1.msra.mxu0 0.0
    %1391 = vmatprep.subr.mxu0 0.0
    %1392 = vmatpush1.msra.mxu0 0.0
    %1393 = vmatprep.subr.mxu0 0.0
    %1394 = vmatpush1.msra.mxu0 0.0
    %1395 = vmatprep.subr.mxu0 0.0
    %1396 = vmatpush1.msra.mxu0 0.0
    %1397 = vmatprep.subr.mxu0 0.0
    %1398 = vmatpush1.msra.mxu0 0.0
    %1399 = vmatprep.subr.mxu0 0.0
    %1400 = vmatpush1.msra.mxu0 0.0
    %1401 = vmatprep.subr.mxu0 0.0
    %1402 = vmatpush1.msra.mxu0 0.0
    %1403 = vmatprep.subr.mxu0 0.0
    %1404 = vmatpush1.msra.mxu0 0.0
    %1405 = vmatprep.subr.mxu0 0.0
    %1406 = vmatpush1.msra.mxu0 0.0
    %1407 = vmatprep.subr.mxu0 0.0
    %1408 = vmatpush1.msra.mxu0 0.0
    %1409 = vmatprep.subr.mxu0 0.0
    %1410 = vmatpush1.msra.mxu0 0.0
    %1411 = vmatprep.subr.mxu0 0.0
    %1412 = vmatpush1.msra.mxu0 0.0
    %1413 = vmatprep.subr.mxu0 0.0
    %1414 = vmatpush1.msra.mxu0 0.0
    %1415 = vmatprep.subr.mxu0 0.0
    %1416 = vmatpush1.msra.mxu0 0.0
    %1417 = vmatprep.subr.mxu0 0.0
    %1418 = vmatpush1.msra.mxu0 0.0
    %1419 = vmatprep.subr.mxu0 0.0
    %1420 = vmatpush1.msra.mxu0 0.0
    %1421 = vmatprep.subr.mxu0 0.0
    %1422 = vmatpush1.msra.mxu0 0.0
    %1423 = vmatprep.subr.mxu0 0.0
    %1424 = vmatpush1.msra.mxu0 0.0
    %1425 = vmatprep.mubr.f32.mxu0 0.0
    %1426 = vmatmul.mubr.f32.gmra.mrb[0].mxu0 %v1359
    %v1427 = vpop.f32.mrb[0].mxu0
    %v1428 = vadd.f32 0.0, %v1427
    %v1429 = vpop.f32.mrb[0].mxu0
    %1430 = vdwg.mxu0
    %1432 = vrot.lane.b32.xlu0 %v1428, 16
    %v1433 = vpop.permute.xlu0 %1432
    %1435 = vst.msk [vmem:[#allocation2 + $0x8] sm:$0xff] %vm1113, %v1433
    %1436 = vrot.lane.b32.xlu0 %v144, 40
    %v1437 = vpop.permute.xlu0 %1436
    %v1440 = vsel %vm150, %v873, 0
    %1442 = vmatprep.subr.mxu0 0.0
    %1443 = vmatpush1.msra.mxu0 %v1437
    %1444 = vmatprep.subr.mxu0 0.0
    %1445 = vmatpush1.msra.mxu0 0.0
    %1446 = vmatprep.subr.mxu0 0.0
    %1447 = vmatpush1.msra.mxu0 0.0
    %1448 = vmatprep.subr.mxu0 0.0
    %1449 = vmatpush1.msra.mxu0 0.0
    %1450 = vmatprep.subr.mxu0 0.0
    %1451 = vmatpush1.msra.mxu0 0.0
    %1452 = vmatprep.subr.mxu0 0.0
    %1453 = vmatpush1.msra.mxu0 0.0
    %1454 = vmatprep.subr.mxu0 0.0
    %1455 = vmatpush1.msra.mxu0 0.0
    %1456 = vmatprep.subr.mxu0 0.0
    %1457 = vmatpush1.msra.mxu0 0.0
    %1458 = vmatprep.subr.mxu0 0.0
    %1459 = vmatpush1.msra.mxu0 0.0
    %1460 = vmatprep.subr.mxu0 0.0
    %1461 = vmatpush1.msra.mxu0 0.0
    %1462 = vmatprep.subr.mxu0 0.0
    %1463 = vmatpush1.msra.mxu0 0.0
    %1464 = vmatprep.subr.mxu0 0.0
    %1465 = vmatpush1.msra.mxu0 0.0
    %1466 = vmatprep.subr.mxu0 0.0
    %1467 = vmatpush1.msra.mxu0 0.0
    %1468 = vmatprep.subr.mxu0 0.0
    %1469 = vmatpush1.msra.mxu0 0.0
    %1470 = vmatprep.subr.mxu0 0.0
    %1471 = vmatpush1.msra.mxu0 0.0
    %1472 = vmatprep.subr.mxu0 0.0
    %1473 = vmatpush1.msra.mxu0 0.0
    %1474 = vmatprep.subr.mxu0 0.0
    %1475 = vmatpush1.msra.mxu0 0.0
    %1476 = vmatprep.subr.mxu0 0.0
    %1477 = vmatpush1.msra.mxu0 0.0
    %1478 = vmatprep.subr.mxu0 0.0
    %1479 = vmatpush1.msra.mxu0 0.0
    %1480 = vmatprep.subr.mxu0 0.0
    %1481 = vmatpush1.msra.mxu0 0.0
    %1482 = vmatprep.subr.mxu0 0.0
    %1483 = vmatpush1.msra.mxu0 0.0
    %1484 = vmatprep.subr.mxu0 0.0
    %1485 = vmatpush1.msra.mxu0 0.0
    %1486 = vmatprep.subr.mxu0 0.0
    %1487 = vmatpush1.msra.mxu0 0.0
    %1488 = vmatprep.subr.mxu0 0.0
    %1489 = vmatpush1.msra.mxu0 0.0
    %1490 = vmatprep.subr.mxu0 0.0
    %1491 = vmatpush1.msra.mxu0 0.0
    %1492 = vmatprep.subr.mxu0 0.0
    %1493 = vmatpush1.msra.mxu0 0.0
    %1494 = vmatprep.subr.mxu0 0.0
    %1495 = vmatpush1.msra.mxu0 0.0
    %1496 = vmatprep.subr.mxu0 0.0
    %1497 = vmatpush1.msra.mxu0 0.0
    %1498 = vmatprep.subr.mxu0 0.0
    %1499 = vmatpush1.msra.mxu0 0.0
    %1500 = vmatprep.subr.mxu0 0.0
    %1501 = vmatpush1.msra.mxu0 0.0
    %1502 = vmatprep.subr.mxu0 0.0
    %1503 = vmatpush1.msra.mxu0 0.0
    %1504 = vmatprep.subr.mxu0 0.0
    %1505 = vmatpush1.msra.mxu0 0.0
    %1506 = vmatprep.mubr.f32.mxu0 0.0
    %1507 = vmatmul.mubr.f32.gmra.mrb[0].mxu0 %v1440
    %v1508 = vpop.f32.mrb[0].mxu0
    %v1509 = vadd.f32 0.0, %v1508
    %v1510 = vpop.f32.mrb[0].mxu0
    %1511 = vdwg.mxu0
    %1513 = vrot.lane.b32.xlu0 %v1509, 24
    %v1514 = vpop.permute.xlu0 %1513
    %1516 = vst.msk [vmem:[#allocation2 + $0x8] sm:$0xff] %vm1195, %v1514
    %v1517 = vld [vmem:[#allocation2] sm:$0xff]
    %v1518 = vld [vmem:[#allocation2 + $0x8] sm:$0xff]
    %v1519 = vpack.c.bf16 %v1518, %v1517
    %v1520 = vld [vmem:[%s4] sm:$0xf]
    %v1521 = vld [vmem:[%s4 + $0x4] sm:$0xf]
    %v1522 = vld [vmem:[%s4 + $0x8] sm:$0xf]
    %v1523 = vld [vmem:[%s4 + $0xc] sm:$0xf]
    %v1524 = vld [vmem:[%s5] sm:$0x1]
    %v1526 = vlaneseq
    %v1527 = vshrl.u32 %v1526, 7
    %v1528 = vsub.s32 0, %v1527
    %v1529 = vrot.slane %v1524, %v1528
    %v1535 = vunpack.c.l.b16 %v1520
    %v1536 = vunpack.c.l.b16 %v1521
    %v1537 = vunpack.c.l.b16 %v1522
    %v1538 = vunpack.c.l.b16 %v1523
    %v1539 = vpack.c.b16 %v1536, %v1535
    %v1540 = vpack.c.b16 %v1538, %v1537
    %v1544 = vsel %vm102, %v1519, 0
    %1546 = vmatprep.subr.bf16.mxu0 0
    %1547 = vmatpush1.bf16.msra.mxu0 %v1539
    %1548 = vmatprep.subr.bf16.mxu0 0
    %1549 = vmatpush1.bf16.msra.mxu0 %v1540
    %1550 = vmatprep.subr.bf16.mxu0 0
    %1551 = vmatpush1.bf16.msra.mxu0 0
    %1552 = vmatprep.subr.bf16.mxu0 0
    %1553 = vmatpush1.bf16.msra.mxu0 0
    %1554 = vmatprep.subr.bf16.mxu0 0
    %1555 = vmatpush1.bf16.msra.mxu0 0
    %1556 = vmatprep.subr.bf16.mxu0 0
    %1557 = vmatpush1.bf16.msra.mxu0 0
    %1558 = vmatprep.subr.bf16.mxu0 0
    %1559 = vmatpush1.bf16.msra.mxu0 0
    %1560 = vmatprep.subr.bf16.mxu0 0
    %1561 = vmatpush1.bf16.msra.mxu0 0
    %1562 = vmatprep.subr.bf16.mxu0 0
    %1563 = vmatpush1.bf16.msra.mxu0 0
    %1564 = vmatprep.subr.bf16.mxu0 0
    %1565 = vmatpush1.bf16.msra.mxu0 0
    %1566 = vmatprep.subr.bf16.mxu0 0
    %1567 = vmatpush1.bf16.msra.mxu0 0
    %1568 = vmatprep.subr.bf16.mxu0 0
    %1569 = vmatpush1.bf16.msra.mxu0 0
    %1570 = vmatprep.subr.bf16.mxu0 0
    %1571 = vmatpush1.bf16.msra.mxu0 0
    %1572 = vmatprep.subr.bf16.mxu0 0
    %1573 = vmatpush1.bf16.msra.mxu0 0
    %1574 = vmatprep.subr.bf16.mxu0 0
    %1575 = vmatpush1.bf16.msra.mxu0 0
    %1576 = vmatprep.subr.bf16.mxu0 0
    %1577 = vmatpush1.bf16.msra.mxu0 0
    %1578 = vmatprep.mubr.bf16.mxu0 0
    %1579 = vmatmul.mubr.bf16.gmra.mrb[0].mxu0 %v1544
    %v1580 = vpop.f32.mrb[0].mxu0
    %v1581 = vadd.f32 %v1529, %v1580
    %v1582 = vpop.f32.mrb[0].mxu0
    %v1583 = vpop.f32.mrb[0].mxu0
    %v1584 = vadd.f32 %v1529, %v1583
    %v1585 = vpop.f32.mrb[0].mxu0
    %1586 = vdwg.mxu0
    %v1587 = vadd.f32 %v1581, %v75
    %v1588 = vadd.f32 %v1584, %v76
    %v1589 = vld [vmem:[%s6] sm:$0x1]
    %v1590 = vld [vmem:[%s7] sm:$0x1]
    %v1591 = vsel %vm102, %v1587, 0.0
    %1592 = vadd.xlane.f32.xlu0 %v1591
    %v1593 = vpop.xlane.xlu0 %1592
    %v1594 = vsel %vm102, %v1588, 0.0
    %1595 = vadd.xlane.f32.xlu0 %v1594
    %v1596 = vpop.xlane.xlu0 %1595
    %v1597 = vrcp.pop 32.0
    %v1598 = vmul.f32 %v1593, %v1597
    %v1599 = vmul.f32 %v1596, %v1597
    %v1600 = vsub.f32 %v1587, %v1598
    %v1601 = vsub.f32 %v1588, %v1599
    %v1602 = vmul.f32 %v1600, %v1600
    %v1603 = vmul.f32 %v1601, %v1601
    %v1604 = vsel %vm102, %v1602, 0.0
    %1605 = vadd.xlane.f32.xlu0 %v1604
    %v1606 = vpop.xlane.xlu0 %1605
    %v1607 = vsel %vm102, %v1603, 0.0
    %1608 = vadd.xlane.f32.xlu0 %v1607
    %v1609 = vpop.xlane.xlu0 %1608
    %v1610 = vmul.f32 %v1606, %v1597
    %v1611 = vmul.f32 %v1609, %v1597
    %v1612 = vadd.f32 %v1610, 1e-05
    %v1613 = vadd.f32 %v1611, 1e-05
    %v1614 = vrsqrt.pop %v1612
    %v1615 = vrsqrt.pop %v1613
    %v1616 = vmul.f32 %v1600, %v1614
    %v1617 = vmul.f32 %v1601, %v1615
    %v1619 = vlaneseq
    %v1620 = vshrl.u32 %v1619, 7
    %v1621 = vsub.s32 0, %v1620
    %v1622 = vrot.slane %v1589, %v1621
    %v1624 = vmul.f32 %v1616, %v1622
    %v1625 = vmul.f32 %v1617, %v1622
    %v1627 = vlaneseq
    %v1628 = vshrl.u32 %v1627, 7
    %v1629 = vsub.s32 0, %v1628
    %v1630 = vrot.slane %v1590, %v1629
    %v1632 = vadd.f32 %v1624, %v1630
    %v1633 = vadd.f32 %v1625, %v1630
    %v1634 = vpack.c.bf16 %v1633, %v1632
    %v1635 = vld [vmem:[#allocation6] sm:$0xf]
    %v1636 = vld [vmem:[#allocation6 + $0x4] sm:$0xf]
    %v1637 = vld [vmem:[#allocation6 + $0x8] sm:$0xf]
    %v1638 = vld [vmem:[#allocation6 + $0xc] sm:$0xf]
    %v1639 = vld [vmem:[%s9] sm:$0x1]
    %v1641 = vlaneseq
    %v1642 = vshrl.u32 %v1641, 7
    %v1643 = vsub.s32 0, %v1642
    %v1644 = vrot.slane %v1639, %v1643
    %v1650 = vunpack.c.l.b16 %v1635
    %v1651 = vunpack.c.l.b16 %v1636
    %v1652 = vunpack.c.l.b16 %v1637
    %v1653 = vunpack.c.l.b16 %v1638
    %v1654 = vpack.c.b16 %v1651, %v1650
    %v1655 = vpack.c.b16 %v1653, %v1652
    %v1659 = vsel %vm102, %v1634, 0
    %1661 = vmatprep.subr.bf16.mxu0 0
    %1662 = vmatpush1.bf16.msra.mxu0 %v1654
    %1663 = vmatprep.subr.bf16.mxu0 0
    %1664 = vmatpush1.bf16.msra.mxu0 %v1655
    %1665 = vmatprep.subr.bf16.mxu0 0
    %1666 = vmatpush1.bf16.msra.mxu0 0
    %1667 = vmatprep.subr.bf16.mxu0 0
    %1668 = vmatpush1.bf16.msra.mxu0 0
    %1669 = vmatprep.subr.bf16.mxu0 0
    %1670 = vmatpush1.bf16.msra.mxu0 0
    %1671 = vmatprep.subr.bf16.mxu0 0
    %1672 = vmatpush1.bf16.msra.mxu0 0
    %1673 = vmatprep.subr.bf16.mxu0 0
    %1674 = vmatpush1.bf16.msra.mxu0 0
    %1675 = vmatprep.subr.bf16.mxu0 0
    %1676 = vmatpush1.bf16.msra.mxu0 0
    %1677 = vmatprep.subr.bf16.mxu0 0
    %1678 = vmatpush1.bf16.msra.mxu0 0
    %1679 = vmatprep.subr.bf16.mxu0 0
    %1680 = vmatpush1.bf16.msra.mxu0 0
    %1681 = vmatprep.subr.bf16.mxu0 0
    %1682 = vmatpush1.bf16.msra.mxu0 0
    %1683 = vmatprep.subr.bf16.mxu0 0
    %1684 = vmatpush1.bf16.msra.mxu0 0
    %1685 = vmatprep.subr.bf16.mxu0 0
    %1686 = vmatpush1.bf16.msra.mxu0 0
    %1687 = vmatprep.subr.bf16.mxu0 0
    %1688 = vmatpush1.bf16.msra.mxu0 0
    %1689 = vmatprep.subr.bf16.mxu0 0
    %1690 = vmatpush1.bf16.msra.mxu0 0
    %1691 = vmatprep.subr.bf16.mxu0 0
    %1692 = vmatpush1.bf16.msra.mxu0 0
    %1693 = vmatprep.mubr.bf16.mxu0 0
    %1694 = vmatmul.mubr.bf16.gmra.mrb[0].mxu0 %v1659
    %v1695 = vpop.f32.mrb[0].mxu0
    %v1696 = vadd.f32 %v1644, %v1695
    %v1697 = vpop.f32.mrb[0].mxu0
    %v1698 = vpop.f32.mrb[0].mxu0
    %v1699 = vadd.f32 %v1644, %v1698
    %v1700 = vpop.f32.mrb[0].mxu0
    %1701 = vdwg.mxu0
    %v1702 = vmax.f32 %v1696, 0.0
    %v1703 = vmax.f32 %v1699, 0.0
    %v1704 = vpack.c.bf16 %v1703, %v1702
    %v1705 = vld [vmem:[%s10] sm:$0xf]
    %v1706 = vld [vmem:[%s10 + $0x4] sm:$0xf]
    %v1707 = vld [vmem:[%s10 + $0x8] sm:$0xf]
    %v1708 = vld [vmem:[%s10 + $0xc] sm:$0xf]
    %v1709 = vld [vmem:[%s10 + $0x10] sm:$0xf]
    %v1710 = vld [vmem:[%s10 + $0x14] sm:$0xf]
    %v1711 = vld [vmem:[%s10 + $0x18] sm:$0xf]
    %v1712 = vld [vmem:[%s10 + $0x1c] sm:$0xf]
    %v1713 = vld [vmem:[%s11] sm:$0x1]
    %v1715 = vlaneseq
    %v1716 = vshrl.u32 %v1715, 7
    %v1717 = vsub.s32 0, %v1716
    %v1718 = vrot.slane %v1713, %v1717
    %v1728 = vunpack.c.l.b16 %v1705
    %v1729 = vunpack.c.l.b16 %v1706
    %v1730 = vunpack.c.l.b16 %v1707
    %v1731 = vunpack.c.l.b16 %v1708
    %v1732 = vunpack.c.l.b16 %v1709
    %v1733 = vunpack.c.l.b16 %v1710
    %v1734 = vunpack.c.l.b16 %v1711
    %v1735 = vunpack.c.l.b16 %v1712
    %v1736 = vpack.c.b16 %v1729, %v1728
    %v1737 = vpack.c.b16 %v1731, %v1730
    %v1738 = vpack.c.b16 %v1733, %v1732
    %v1739 = vpack.c.b16 %v1735, %v1734
    %vm1744 = vcmask 523264
    %v1746 = vsel %vm1744, %v1704, 0
    %1748 = vmatprep.subr.bf16.mxu0 0
    %1749 = vmatpush1.bf16.msra.mxu0 %v1736
    %1750 = vmatprep.subr.bf16.mxu0 0
    %1751 = vmatpush1.bf16.msra.mxu0 %v1737
    %1752 = vmatprep.subr.bf16.mxu0 0
    %1753 = vmatpush1.bf16.msra.mxu0 %v1738
    %1754 = vmatprep.subr.bf16.mxu0 0
    %1755 = vmatpush1.bf16.msra.mxu0 %v1739
    %1756 = vmatprep.subr.bf16.mxu0 0
    %1757 = vmatpush1.bf16.msra.mxu0 0
    %1758 = vmatprep.subr.bf16.mxu0 0
    %1759 = vmatpush1.bf16.msra.mxu0 0
    %1760 = vmatprep.subr.bf16.mxu0 0
    %1761 = vmatpush1.bf16.msra.mxu0 0
    %1762 = vmatprep.subr.bf16.mxu0 0
    %1763 = vmatpush1.bf16.msra.mxu0 0
    %1764 = vmatprep.subr.bf16.mxu0 0
    %1765 = vmatpush1.bf16.msra.mxu0 0
    %1766 = vmatprep.subr.bf16.mxu0 0
    %1767 = vmatpush1.bf16.msra.mxu0 0
    %1768 = vmatprep.subr.bf16.mxu0 0
    %1769 = vmatpush1.bf16.msra.mxu0 0
    %1770 = vmatprep.subr.bf16.mxu0 0
    %1771 = vmatpush1.bf16.msra.mxu0 0
    %1772 = vmatprep.subr.bf16.mxu0 0
    %1773 = vmatpush1.bf16.msra.mxu0 0
    %1774 = vmatprep.subr.bf16.mxu0 0
    %1775 = vmatpush1.bf16.msra.mxu0 0
    %1776 = vmatprep.subr.bf16.mxu0 0
    %1777 = vmatpush1.bf16.msra.mxu0 0
    %1778 = vmatprep.subr.bf16.mxu0 0
    %1779 = vmatpush1.bf16.msra.mxu0 0
    %1780 = vmatprep.mubr.bf16.mxu0 0
    %1781 = vmatmul.mubr.bf16.gmra.mrb[0].mxu0 %v1746
    %v1782 = vpop.f32.mrb[0].mxu0
    %v1783 = vadd.f32 %v1718, %v1782
    %v1784 = vpop.f32.mrb[0].mxu0
    %v1785 = vpop.f32.mrb[0].mxu0
    %v1786 = vadd.f32 %v1718, %v1785
    %v1787 = vpop.f32.mrb[0].mxu0
    %1788 = vdwg.mxu0
    %v1789 = vadd.f32 %v1783, %v1632
    %v1790 = vadd.f32 %v1786, %v1633
    %v1791 = vld [vmem:[%s12] sm:$0x1]
    %v1792 = vld [vmem:[%s13] sm:$0x1]
    %v1793 = vsel %vm102, %v1789, 0.0
    %1794 = vadd.xlane.f32.xlu0 %v1793
    %v1795 = vpop.xlane.xlu0 %1794
    %v1796 = vsel %vm102, %v1790, 0.0
    %1797 = vadd.xlane.f32.xlu0 %v1796
    %v1798 = vpop.xlane.xlu0 %1797
    %v1799 = vmul.f32 %v1795, %v1597
    %v1800 = vmul.f32 %v1798, %v1597
    %v1801 = vsub.f32 %v1789, %v1799
    %v1802 = vsub.f32 %v1790, %v1800
    %v1803 = vmul.f32 %v1801, %v1801
    %v1804 = vmul.f32 %v1802, %v1802
    %v1805 = vsel %vm102, %v1803, 0.0
    %1806 = vadd.xlane.f32.xlu0 %v1805
    %v1807 = vpop.xlane.xlu0 %1806
    %v1808 = vsel %vm102, %v1804, 0.0
    %1809 = vadd.xlane.f32.xlu0 %v1808
    %v1810 = vpop.xlane.xlu0 %1809
    %v1811 = vmul.f32 %v1807, %v1597
    %v1812 = vmul.f32 %v1810, %v1597
    %v1813 = vadd.f32 %v1811, 1e-05
    %v1814 = vadd.f32 %v1812, 1e-05
    %v1815 = vrsqrt.pop %v1813
    %v1816 = vrsqrt.pop %v1814
    %v1817 = vmul.f32 %v1801, %v1815
    %v1818 = vmul.f32 %v1802, %v1816
    %v1820 = vlaneseq
    %v1821 = vshrl.u32 %v1820, 7
    %v1822 = vsub.s32 0, %v1821
    %v1823 = vrot.slane %v1791, %v1822
    %v1825 = vmul.f32 %v1817, %v1823
    %v1826 = vmul.f32 %v1818, %v1823
    %v1828 = vlaneseq
    %v1829 = vshrl.u32 %v1828, 7
    %v1830 = vsub.s32 0, %v1829
    %v1831 = vrot.slane %v1792, %v1830
    %v1833 = vadd.f32 %v1825, %v1831
    %v1834 = vadd.f32 %v1826, %v1831
    %1835 = vst.msk [vmem:[#allocation8] sm:$0xff] %vm102, %v1833
    %1836 = vst.msk [vmem:[#allocation8 + $0x8] sm:$0xff] %vm102, %v1834
    // Predicated region
    $region66: #{tpu_custom_call.1} parent=1 // pred_check
      _
    $region67: #{tpu_custom_call.1} parent=1 // pred_check_branch
      %1838 = sbr.rel (0) target = $region69
    $region68: #{tpu_custom_call.1} parent=1 // pred_region
      %s1840 = ssub.s32 256, 256
      %1841 = vsyncadd [#allocation5], %s1840
      %s1842 = sshll.u32 [#allocation8], 4
      %s1843 = int_to_ptr.vmem [resolvable:$true] %s1842
      %1848 = dma.vmem_to_hbm [thread:$0]  %s1843, 256, %s14, [#allocation5], 128, 128, 8
    $region69: #{tpu_custom_call.1} parent=1 // pred_fallthru
      _
    // Predicated region
    $region70: #{tpu_custom_call.1} parent=1 // pred_check
      _
    $region71: #{tpu_custom_call.1} parent=1 // pred_check_branch
      %1850 = sbr.rel (0) target = $region73
    $region72: #{tpu_custom_call.1} parent=1 // pred_region
      %1851 = dma.done [#allocation5], 256
    $region73: #{tpu_custom_call.1} parent=1 // pred_fallthru
      _
    %1852 = vsyncpa [#allocation4], 1
    %1853 = vsyncpa [#allocation7], 1
    %1854 = vsyncpa [#allocation5], 1

</llo_original>
